<compile_context>
chip_gen: v5e
topology: v5e:2x2
jax: 0.10.0
libtpu: 0.0.40
codegen_flags: <defaults>
</compile_context>

<pallas_src>
import jax
import jax.numpy as jnp
import numpy as np
from jax.experimental import pallas as pl
from jax.experimental.pallas import tpu as pltpu


def _mm(a, b):
    return jnp.dot(a, b, preferred_element_type=jnp.float32)


# ---------------------------------------------------------------------------
# The fused LeNet kernel (one batch tile of TB samples per grid step)
# ---------------------------------------------------------------------------
def _lenet_kernel(xt_ref, w1b_ref, b1_ref, w2b_ref, b2_ref, s1_ref, s2_ref,
                  fc1w_ref, fc1b_ref, fc2w_ref, fc2b_ref, fc3w_ref, fc3b_ref,
                  o_ref, cm1_ref, cm2_ref):
    tb = o_ref.shape[0]

    # conv1 (+bias, ReLU): 5 banded taps, batch folded into M.
    # xt_ref[i] rows are b*32 + oh (sample-major); output col = co*24 + ow.
    a1 = b1_ref[...] + sum(_mm(xt_ref[i], w1b_ref[i]) for i in range(5))
    a1 = jnp.maximum(a1, 0.0)                                    # (tb*32, 144)

    # 2x2 max-pool #1: lane (width) half via selection matmuls, row (height)
    # half via stride-2 sublane reads from a VMEM scratch.
    cm1_ref[...] = jnp.maximum(_mm(a1, s1_ref[0]), _mm(a1, s1_ref[1]))
    p1 = jnp.maximum(cm1_ref[pl.ds(0, tb * 16, 2), :],
                     cm1_ref[pl.ds(1, tb * 16, 2), :])           # (tb*16, 72)
    p1 = p1.reshape(tb, 16, 72)      # 16 pooled rows/sample (12 valid + 4 pad)

    # conv2 (+bias, ReLU): 5 banded taps over the pooled rows.
    a2 = b2_ref[...] + sum(
        _mm(p1[:, i:i + 8, :].reshape(tb * 8, 72), w2b_ref[i]) for i in range(5))
    a2 = jnp.maximum(a2, 0.0)                                    # (tb*8, 128)

    # 2x2 max-pool #2 (lane half); the row half is fused into the fc1 gather.
    cm2_ref[...] = jnp.maximum(_mm(a2, s2_ref[0]), _mm(a2, s2_ref[1]))

    # fc1: banded over the 4 pooled rows -> 4 (tb,64)x(64,128) GEMMs.
    h1 = fc1b_ref[...]
    for h in range(4):
        p2_h = jnp.maximum(cm2_ref[pl.ds(2 * h, tb, 8), :],
                           cm2_ref[pl.ds(2 * h + 1, tb, 8), :])  # (tb, 64)
        h1 = h1 + _mm(p2_h, fc1w_ref[h])
    h1 = jnp.maximum(h1, 0.0)                                    # (tb, 128)

    # fc2 / fc3 (outputs padded to 128 lanes -> unmasked stores).
    h2 = jnp.maximum(_mm(h1, fc2w_ref[...]) + fc2b_ref[...], 0.0)
    o_ref[...] = _mm(h2, fc3w_ref[...]) + fc3b_ref[...]          # (tb, 128)


# ---------------------------------------------------------------------------
# Wrapper: host-side weight repacking + pallas_call
# ---------------------------------------------------------------------------
def _band_conv_weights(w, out_w, in_w):
    """(Cout,Cin,KH,KW) -> banded (KH, Cin*in_w, Cout*out_w):
    banded[i, ci*in_w + q + j, co*out_w + q] = w[co, ci, i, j]."""
    w = w.astype(jnp.float32)
    cout, cin, kh, kw = w.shape
    i, co, ci, q, j = jnp.meshgrid(
        jnp.arange(kh), jnp.arange(cout), jnp.arange(cin),
        jnp.arange(out_w), jnp.arange(kw), indexing="ij")
    banded = jnp.zeros((kh, cin * in_w, cout * out_w), jnp.float32)
    return banded.at[i, ci * in_w + q + j, co * out_w + q].set(w[co, ci, i, j])


def _col_pool_selectors(n_ch, width):
    """(2, n_ch*width, n_ch*width//2) 0/1 matrices picking even/odd columns of
    each channel block (lane half of the 2x2 pool), built host-side."""
    half = width // 2
    sel = np.zeros((2, n_ch * width, n_ch * half), np.float32)
    for ch in range(n_ch):
        for q in range(half):
            sel[0, ch * width + 2 * q, ch * half + q] = 1.0
            sel[1, ch * width + 2 * q + 1, ch * half + q] = 1.0
    return jnp.asarray(sel)


def _const_spec(shape):
    zeros = (0,) * len(shape)
    return pl.BlockSpec(shape, lambda b: zeros)


def lenet_forward(params, x, *, block_batch=16):
    """x: (B, 1, 28, 28) float32 NCHW -> (B, 10) logits."""
    B = x.shape[0]
    x3 = x.astype(jnp.float32).reshape(B, 28, 28)

    tb = min(int(block_batch), B)
    bp = ((B + tb - 1) // tb) * tb

    # Pad batch to a tile multiple and rows 28->36 so each sample yields 32
    # conv1 rows (24 valid + 8 junk) => tile-aligned reshapes in the kernel.
    xpad = jnp.pad(x3, ((0, bp - B), (0, 8), (0, 0)))              # (bp, 36, 28)
    # Pre-slice the 5 vertical conv1 taps so the kernel's tap-i LHS is a plain
    # 2-D load: xtap[i, b*32 + oh, :] = xpad[b, oh + i, :].
    xtap = jnp.stack(
        [xpad[:, i:i + 32, :].reshape(bp * 32, 28) for i in range(5)])

    w1b = _band_conv_weights(params["c1_w"], out_w=24, in_w=28)    # (5, 28, 144)
    w2b = _band_conv_weights(params["c3_w"], out_w=8, in_w=12)     # (5, 72, 128)
    b1row = jnp.repeat(params["c1_b"], 24)[None, :]                # (1, 144)
    b2row = jnp.repeat(params["c3_b"], 8)[None, :]                 # (1, 128)

    s1 = _col_pool_selectors(6, 24)                                # (2, 144, 72)
    s2 = _col_pool_selectors(16, 8)                                # (2, 128, 64)

    # fc1 rows permuted from PyTorch flatten order (c*16 + h*4 + w) to the
    # kernel's pooled layout (h, c*4 + w); out dim padded 120->128, split per h.
    r = jnp.arange(256)
    h, rem = r // 64, r % 64
    c, w = rem // 4, rem % 4
    fc1w = jnp.pad(params["fc1_w"][c * 16 + h * 4 + w, :],
                   ((0, 0), (0, 8))).reshape(4, 64, 128)
    fc1b = jnp.pad(params["fc1_b"], (0, 8))[None, :]               # (1, 128)
    fc2w = jnp.pad(params["fc2_w"], ((0, 8), (0, 44)))             # (128, 128)
    fc2b = jnp.pad(params["fc2_b"], (0, 44))[None, :]
    fc3w = jnp.pad(params["fc3_w"], ((0, 44), (0, 118)))           # (128, 128)
    fc3b = jnp.pad(params["fc3_b"], (0, 118))[None, :]

    out = pl.pallas_call(
        _lenet_kernel,
        out_shape=jax.ShapeDtypeStruct((bp, 128), jnp.float32),
        grid=(bp // tb,),
        in_specs=[
            pl.BlockSpec((5, tb * 32, 28), lambda b: (0, b, 0)),   # batch tile
            _const_spec((5, 28, 144)), _const_spec((1, 144)),
            _const_spec((5, 72, 128)), _const_spec((1, 128)),
            _const_spec((2, 144, 72)), _const_spec((2, 128, 64)),
            _const_spec((4, 64, 128)), _const_spec((1, 128)),
            _const_spec((128, 128)), _const_spec((1, 128)),
            _const_spec((128, 128)), _const_spec((1, 128)),
        ],
        out_specs=pl.BlockSpec((tb, 128), lambda b: (b, 0)),
        scratch_shapes=[pltpu.VMEM((tb * 32, 72), jnp.float32),
                        pltpu.VMEM((tb * 8, 64), jnp.float32)],
        compiler_params=pltpu.CompilerParams(
            dimension_semantics=("parallel",)),
    )(xtap, w1b, b1row, w2b, b2row, s1, s2,
      fc1w, fc1b, fc2w, fc2b, fc3w, fc3b)

    return out[:B, :10]


# ---------------------------------------------------------------------------
# Deterministic PyTorch-like init and a pure-JAX reference for validation
# ---------------------------------------------------------------------------
def init_params(key):
    ks = jax.random.split(key, 10)

    def u(k, shape, fan_in):
        bound = 1.0 / jnp.sqrt(jnp.float32(fan_in))
        return jax.random.uniform(k, shape, jnp.float32, -bound, bound)

    return {
        "c1_w": u(ks[0], (6, 1, 5, 5), 25),
        "c1_b": u(ks[1], (6,), 25),
        "c3_w": u(ks[2], (16, 6, 5, 5), 150),
        "c3_b": u(ks[3], (16,), 150),
        "fc1_w": u(ks[4], (256, 120), 256),   # stored (in, out)
        "fc1_b": u(ks[5], (120,), 256),
        "fc2_w": u(ks[6], (120, 84), 120),
        "fc2_b": u(ks[7], (84,), 120),
        "fc3_w": u(ks[8], (84, 10), 84),
        "fc3_b": u(ks[9], (10,), 84),
    }


def lenet_reference(params, x):
    hi = jax.lax.Precision.HIGHEST

    def conv(x, w, b):
        y = jax.lax.conv_general_dilated(
            x, w, window_strides=(1, 1), padding="VALID",
            dimension_numbers=("NCHW", "OIHW", "NCHW"), precision=hi)
        return y + b[None, :, None, None]

    def pool(x):
        return jax.lax.reduce_window(
            x, -jnp.inf, jax.lax.max, (1, 1, 2, 2), (1, 1, 2, 2), "VALID")

    x = pool(jax.nn.relu(conv(x, params["c1_w"], params["c1_b"])))
    x = pool(jax.nn.relu(conv(x, params["c3_w"], params["c3_b"])))
    x = x.reshape(x.shape[0], -1)
    x = jax.nn.relu(jnp.dot(x, params["fc1_w"], precision=hi) + params["fc1_b"])
    x = jax.nn.relu(jnp.dot(x, params["fc2_w"], precision=hi) + params["fc2_b"])
    return jnp.dot(x, params["fc3_w"], precision=hi) + params["fc3_b"]


if __name__ == "__main__":
    key = jax.random.PRNGKey(0)
    k_params, k_x, k_xb = jax.random.split(key, 3)
    params = init_params(k_params)

    fwd = jax.jit(lenet_forward)

    # Small demo batch (LeNet's fc1 = 16*4*4 implies 1x28x28 inputs).
    x = jax.random.normal(k_x, (2, 1, 28, 28), dtype=jnp.float32)
    logits = fwd(params, x)
    jax.block_until_ready(logits)
    assert logits.shape == (2, 10) and logits.dtype == jnp.float32

    ref = lenet_reference(params, x)
    err = float(jnp.max(jnp.abs(logits - ref)))
    # Tight enough to catch any layout/permutation bug (those show up as O(0.1)
    # logit errors); loose enough for MXU f32 rounding-mode differences.
    assert jnp.allclose(logits, ref, atol=5e-3, rtol=1e-3), ("max abs err", err)

    # Larger batch exercising the batch grid (padding, pipelining, parallel axis).
    xb = jax.random.normal(k_xb, (36, 1, 28, 28), dtype=jnp.float32)
    logits_b = fwd(params, xb)
    jax.block_until_ready(logits_b)
    ref_b = lenet_reference(params, xb)
    err_b = float(jnp.max(jnp.abs(logits_b - ref_b)))
    assert logits_b.shape == (36, 10)
    assert jnp.allclose(logits_b, ref_b, atol=5e-3, rtol=1e-3), ("max abs err", err_b)

    print("KERNEL_OK")
</pallas_src>

<mosaic_0001>
module attributes {stable_mosaic.version = 11 : i64} {
  func.func @_lenet_kernel(%arg0: i32, %arg1: memref<5x64x28xf32, #tpu.memory_space<vmem>>, %arg2: memref<5x28x144xf32, #tpu.memory_space<vmem>>, %arg3: memref<1x144xf32, #tpu.memory_space<vmem>>, %arg4: memref<5x72x128xf32, #tpu.memory_space<vmem>>, %arg5: memref<1x128xf32, #tpu.memory_space<vmem>>, %arg6: memref<2x144x72xf32, #tpu.memory_space<vmem>>, %arg7: memref<2x128x64xf32, #tpu.memory_space<vmem>>, %arg8: memref<4x64x128xf32, #tpu.memory_space<vmem>>, %arg9: memref<1x128xf32, #tpu.memory_space<vmem>>, %arg10: memref<128x128xf32, #tpu.memory_space<vmem>>, %arg11: memref<1x128xf32, #tpu.memory_space<vmem>>, %arg12: memref<128x128xf32, #tpu.memory_space<vmem>>, %arg13: memref<1x128xf32, #tpu.memory_space<vmem>>, %arg14: memref<2x128xf32, #tpu.memory_space<vmem>>, %arg15: memref<64x72xf32, #tpu.memory_space<vmem>>, %arg16: memref<16x64xf32, #tpu.memory_space<vmem>>) attributes {dimension_semantics = [#tpu.dimension_semantics<parallel>], iteration_bounds = array<i64: 1>, scalar_prefetch = 0 : i64, scratch_operands = 2 : i64, tpu.core_type = #tpu.core_type<tc>, window_params = [{transform_indices = @transform_0, window_bounds = array<i64: 5, 64, 28>}, {pipeline_mode = #tpu.pipeline_mode<synchronous>, transform_indices = @transform_1, window_bounds = array<i64: 5, 28, 144>}, {pipeline_mode = #tpu.pipeline_mode<synchronous>, transform_indices = @transform_2, window_bounds = array<i64: 1, 144>}, {pipeline_mode = #tpu.pipeline_mode<synchronous>, transform_indices = @transform_3, window_bounds = array<i64: 5, 72, 128>}, {pipeline_mode = #tpu.pipeline_mode<synchronous>, transform_indices = @transform_4, window_bounds = array<i64: 1, 128>}, {pipeline_mode = #tpu.pipeline_mode<synchronous>, transform_indices = @transform_5, window_bounds = array<i64: 2, 144, 72>}, {pipeline_mode = #tpu.pipeline_mode<synchronous>, transform_indices = @transform_6, window_bounds = array<i64: 2, 128, 64>}, {pipeline_mode = #tpu.pipeline_mode<synchronous>, transform_indices = @transform_7, window_bounds = array<i64: 4, 64, 128>}, {pipeline_mode = #tpu.pipeline_mode<synchronous>, transform_indices = @transform_8, window_bounds = array<i64: 1, 128>}, {pipeline_mode = #tpu.pipeline_mode<synchronous>, transform_indices = @transform_9, window_bounds = array<i64: 128, 128>}, {pipeline_mode = #tpu.pipeline_mode<synchronous>, transform_indices = @transform_10, window_bounds = array<i64: 1, 128>}, {pipeline_mode = #tpu.pipeline_mode<synchronous>, transform_indices = @transform_11, window_bounds = array<i64: 128, 128>}, {pipeline_mode = #tpu.pipeline_mode<synchronous>, transform_indices = @transform_12, window_bounds = array<i64: 1, 128>}, {transform_indices = @transform_13, window_bounds = array<i64: 2, 128>}]} {
    %c0 = arith.constant 0 : index
    %c0_0 = arith.constant 0 : index
    %0 = vector.load %arg3[%c0, %c0_0] : memref<1x144xf32, #tpu.memory_space<vmem>>, vector<1x144xf32>
    %c0_1 = arith.constant 0 : index
    %c0_2 = arith.constant 0 : index
    %c0_3 = arith.constant 0 : index
    %1 = vector.load %arg1[%c0_1, %c0_2, %c0_3] : memref<5x64x28xf32, #tpu.memory_space<vmem>>, vector<1x64x28xf32>
    %2 = vector.shape_cast %1 : vector<1x64x28xf32> to vector<64x28xf32>
    %c0_4 = arith.constant 0 : index
    %c0_5 = arith.constant 0 : index
    %c0_6 = arith.constant 0 : index
    %3 = vector.load %arg2[%c0_4, %c0_5, %c0_6] : memref<5x28x144xf32, #tpu.memory_space<vmem>>, vector<1x28x144xf32>
    %4 = vector.shape_cast %3 : vector<1x28x144xf32> to vector<28x144xf32>
    %cst = arith.constant dense<0.000000e+00> : vector<64x144xf32>
    %5 = tpu.matmul %2, %4, %cst {dimension_numbers = #tpu.dot_dimension_numbers<[1], [0], [0], [1], [0, 0, 1, 1], [], []>} : vector<64x28xf32>, vector<28x144xf32>, vector<64x144xf32> -> vector<64x144xf32>
    %cst_7 = arith.constant 0.000000e+00 : f32
    %6 = vector.broadcast %cst_7 : f32 to vector<64x144xf32>
    %7 = arith.addf %6, %5 : vector<64x144xf32>
    %c1 = arith.constant 1 : index
    %c0_8 = arith.constant 0 : index
    %c0_9 = arith.constant 0 : index
    %8 = vector.load %arg1[%c1, %c0_8, %c0_9] : memref<5x64x28xf32, #tpu.memory_space<vmem>>, vector<1x64x28xf32>
    %9 = vector.shape_cast %8 : vector<1x64x28xf32> to vector<64x28xf32>
    %c1_10 = arith.constant 1 : index
    %c0_11 = arith.constant 0 : index
    %c0_12 = arith.constant 0 : index
    %10 = vector.load %arg2[%c1_10, %c0_11, %c0_12] : memref<5x28x144xf32, #tpu.memory_space<vmem>>, vector<1x28x144xf32>
    %11 = vector.shape_cast %10 : vector<1x28x144xf32> to vector<28x144xf32>
    %cst_13 = arith.constant dense<0.000000e+00> : vector<64x144xf32>
    %12 = tpu.matmul %9, %11, %cst_13 {dimension_numbers = #tpu.dot_dimension_numbers<[1], [0], [0], [1], [0, 0, 1, 1], [], []>} : vector<64x28xf32>, vector<28x144xf32>, vector<64x144xf32> -> vector<64x144xf32>
    %13 = arith.addf %7, %12 : vector<64x144xf32>
    %c2 = arith.constant 2 : index
    %c0_14 = arith.constant 0 : index
    %c0_15 = arith.constant 0 : index
    %14 = vector.load %arg1[%c2, %c0_14, %c0_15] : memref<5x64x28xf32, #tpu.memory_space<vmem>>, vector<1x64x28xf32>
    %15 = vector.shape_cast %14 : vector<1x64x28xf32> to vector<64x28xf32>
    %c2_16 = arith.constant 2 : index
    %c0_17 = arith.constant 0 : index
    %c0_18 = arith.constant 0 : index
    %16 = vector.load %arg2[%c2_16, %c0_17, %c0_18] : memref<5x28x144xf32, #tpu.memory_space<vmem>>, vector<1x28x144xf32>
    %17 = vector.shape_cast %16 : vector<1x28x144xf32> to vector<28x144xf32>
    %cst_19 = arith.constant dense<0.000000e+00> : vector<64x144xf32>
    %18 = tpu.matmul %15, %17, %cst_19 {dimension_numbers = #tpu.dot_dimension_numbers<[1], [0], [0], [1], [0, 0, 1, 1], [], []>} : vector<64x28xf32>, vector<28x144xf32>, vector<64x144xf32> -> vector<64x144xf32>
    %19 = arith.addf %13, %18 : vector<64x144xf32>
    %c3 = arith.constant 3 : index
    %c0_20 = arith.constant 0 : index
    %c0_21 = arith.constant 0 : index
    %20 = vector.load %arg1[%c3, %c0_20, %c0_21] : memref<5x64x28xf32, #tpu.memory_space<vmem>>, vector<1x64x28xf32>
    %21 = vector.shape_cast %20 : vector<1x64x28xf32> to vector<64x28xf32>
    %c3_22 = arith.constant 3 : index
    %c0_23 = arith.constant 0 : index
    %c0_24 = arith.constant 0 : index
    %22 = vector.load %arg2[%c3_22, %c0_23, %c0_24] : memref<5x28x144xf32, #tpu.memory_space<vmem>>, vector<1x28x144xf32>
    %23 = vector.shape_cast %22 : vector<1x28x144xf32> to vector<28x144xf32>
    %cst_25 = arith.constant dense<0.000000e+00> : vector<64x144xf32>
    %24 = tpu.matmul %21, %23, %cst_25 {dimension_numbers = #tpu.dot_dimension_numbers<[1], [0], [0], [1], [0, 0, 1, 1], [], []>} : vector<64x28xf32>, vector<28x144xf32>, vector<64x144xf32> -> vector<64x144xf32>
    %25 = arith.addf %19, %24 : vector<64x144xf32>
    %c4 = arith.constant 4 : index
    %c0_26 = arith.constant 0 : index
    %c0_27 = arith.constant 0 : index
    %26 = vector.load %arg1[%c4, %c0_26, %c0_27] : memref<5x64x28xf32, #tpu.memory_space<vmem>>, vector<1x64x28xf32>
    %27 = vector.shape_cast %26 : vector<1x64x28xf32> to vector<64x28xf32>
    %c4_28 = arith.constant 4 : index
    %c0_29 = arith.constant 0 : index
    %c0_30 = arith.constant 0 : index
    %28 = vector.load %arg2[%c4_28, %c0_29, %c0_30] : memref<5x28x144xf32, #tpu.memory_space<vmem>>, vector<1x28x144xf32>
    %29 = vector.shape_cast %28 : vector<1x28x144xf32> to vector<28x144xf32>
    %cst_31 = arith.constant dense<0.000000e+00> : vector<64x144xf32>
    %30 = tpu.matmul %27, %29, %cst_31 {dimension_numbers = #tpu.dot_dimension_numbers<[1], [0], [0], [1], [0, 0, 1, 1], [], []>} : vector<64x28xf32>, vector<28x144xf32>, vector<64x144xf32> -> vector<64x144xf32>
    %31 = arith.addf %25, %30 : vector<64x144xf32>
    %32 = vector.broadcast %0 : vector<1x144xf32> to vector<64x144xf32>
    %33 = arith.addf %32, %31 : vector<64x144xf32>
    %cst_32 = arith.constant 0.000000e+00 : f32
    %34 = vector.broadcast %cst_32 : f32 to vector<64x144xf32>
    %35 = arith.maximumf %33, %34 : vector<64x144xf32>
    %c0_33 = arith.constant 0 : index
    %c0_34 = arith.constant 0 : index
    %c0_35 = arith.constant 0 : index
    %36 = vector.load %arg6[%c0_33, %c0_34, %c0_35] : memref<2x144x72xf32, #tpu.memory_space<vmem>>, vector<1x144x72xf32>
    %37 = vector.shape_cast %36 : vector<1x144x72xf32> to vector<144x72xf32>
    %cst_36 = arith.constant dense<0.000000e+00> : vector<64x72xf32>
    %38 = tpu.matmul %35, %37, %cst_36 {dimension_numbers = #tpu.dot_dimension_numbers<[1], [0], [0], [1], [0, 0, 1, 1], [], []>} : vector<64x144xf32>, vector<144x72xf32>, vector<64x72xf32> -> vector<64x72xf32>
    %c1_37 = arith.constant 1 : index
    %c0_38 = arith.constant 0 : index
    %c0_39 = arith.constant 0 : index
    %39 = vector.load %arg6[%c1_37, %c0_38, %c0_39] : memref<2x144x72xf32, #tpu.memory_space<vmem>>, vector<1x144x72xf32>
    %40 = vector.shape_cast %39 : vector<1x144x72xf32> to vector<144x72xf32>
    %cst_40 = arith.constant dense<0.000000e+00> : vector<64x72xf32>
    %41 = tpu.matmul %35, %40, %cst_40 {dimension_numbers = #tpu.dot_dimension_numbers<[1], [0], [0], [1], [0, 0, 1, 1], [], []>} : vector<64x144xf32>, vector<144x72xf32>, vector<64x72xf32> -> vector<64x72xf32>
    %42 = arith.maximumf %38, %41 : vector<64x72xf32>
    %c0_41 = arith.constant 0 : index
    %c0_42 = arith.constant 0 : index
    %43 = vector.load %arg15[%c0_41, %c0_42] : memref<64x72xf32, #tpu.memory_space<vmem>>, vector<64x72xf32>
    tpu.vector_store %arg15[%c0_41, %c0_42], %42 {strides = array<i32>} : memref<64x72xf32, #tpu.memory_space<vmem>>, vector<64x72xf32>,
    %c0_43 = arith.constant 0 : index
    %c0_44 = arith.constant 0 : index
    %44 = tpu.strided_load %arg15[%c0_43, %c0_44] {strides = array<i32: 2, 1>} : memref<64x72xf32, #tpu.memory_space<vmem>>, vector<32x72xf32>
    %c1_45 = arith.constant 1 : index
    %c0_46 = arith.constant 0 : index
    %45 = tpu.strided_load %arg15[%c1_45, %c0_46] {strides = array<i32: 2, 1>} : memref<64x72xf32, #tpu.memory_space<vmem>>, vector<32x72xf32>
    %46 = arith.maximumf %44, %45 : vector<32x72xf32>
    %47 = vector.shape_cast %46 : vector<32x72xf32> to vector<2x16x72xf32>
    %c0_47 = arith.constant 0 : index
    %c0_48 = arith.constant 0 : index
    %48 = vector.load %arg5[%c0_47, %c0_48] : memref<1x128xf32, #tpu.memory_space<vmem>>, vector<1x128xf32>
    %49 = vector.extract_strided_slice %47 {offsets = [0, 0, 0], sizes = [2, 8, 72], strides = [1, 1, 1]} : vector<2x16x72xf32> to vector<2x8x72xf32>
    %50 = vector.shape_cast %49 : vector<2x8x72xf32> to vector<16x72xf32>
    %c0_49 = arith.constant 0 : index
    %c0_50 = arith.constant 0 : index
    %c0_51 = arith.constant 0 : index
    %51 = vector.load %arg4[%c0_49, %c0_50, %c0_51] : memref<5x72x128xf32, #tpu.memory_space<vmem>>, vector<1x72x128xf32>
    %52 = vector.shape_cast %51 : vector<1x72x128xf32> to vector<72x128xf32>
    %cst_52 = arith.constant dense<0.000000e+00> : vector<16x128xf32>
    %53 = tpu.matmul %50, %52, %cst_52 {dimension_numbers = #tpu.dot_dimension_numbers<[1], [0], [0], [1], [0, 0, 1, 1], [], []>} : vector<16x72xf32>, vector<72x128xf32>, vector<16x128xf32> -> vector<16x128xf32>
    %cst_53 = arith.constant 0.000000e+00 : f32
    %54 = vector.broadcast %cst_53 : f32 to vector<16x128xf32>
    %55 = arith.addf %54, %53 : vector<16x128xf32>
    %56 = vector.extract_strided_slice %47 {offsets = [0, 1, 0], sizes = [2, 8, 72], strides = [1, 1, 1]} : vector<2x16x72xf32> to vector<2x8x72xf32>
    %57 = vector.shape_cast %56 : vector<2x8x72xf32> to vector<16x72xf32>
    %c1_54 = arith.constant 1 : index
    %c0_55 = arith.constant 0 : index
    %c0_56 = arith.constant 0 : index
    %58 = vector.load %arg4[%c1_54, %c0_55, %c0_56] : memref<5x72x128xf32, #tpu.memory_space<vmem>>, vector<1x72x128xf32>
    %59 = vector.shape_cast %58 : vector<1x72x128xf32> to vector<72x128xf32>
    %cst_57 = arith.constant dense<0.000000e+00> : vector<16x128xf32>
    %60 = tpu.matmul %57, %59, %cst_57 {dimension_numbers = #tpu.dot_dimension_numbers<[1], [0], [0], [1], [0, 0, 1, 1], [], []>} : vector<16x72xf32>, vector<72x128xf32>, vector<16x128xf32> -> vector<16x128xf32>
    %61 = arith.addf %55, %60 : vector<16x128xf32>
    %62 = vector.extract_strided_slice %47 {offsets = [0, 2, 0], sizes = [2, 8, 72], strides = [1, 1, 1]} : vector<2x16x72xf32> to vector<2x8x72xf32>
    %63 = vector.shape_cast %62 : vector<2x8x72xf32> to vector<16x72xf32>
    %c2_58 = arith.constant 2 : index
    %c0_59 = arith.constant 0 : index
    %c0_60 = arith.constant 0 : index
    %64 = vector.load %arg4[%c2_58, %c0_59, %c0_60] : memref<5x72x128xf32, #tpu.memory_space<vmem>>, vector<1x72x128xf32>
    %65 = vector.shape_cast %64 : vector<1x72x128xf32> to vector<72x128xf32>
    %cst_61 = arith.constant dense<0.000000e+00> : vector<16x128xf32>
    %66 = tpu.matmul %63, %65, %cst_61 {dimension_numbers = #tpu.dot_dimension_numbers<[1], [0], [0], [1], [0, 0, 1, 1], [], []>} : vector<16x72xf32>, vector<72x128xf32>, vector<16x128xf32> -> vector<16x128xf32>
    %67 = arith.addf %61, %66 : vector<16x128xf32>
    %68 = vector.extract_strided_slice %47 {offsets = [0, 3, 0], sizes = [2, 8, 72], strides = [1, 1, 1]} : vector<2x16x72xf32> to vector<2x8x72xf32>
    %69 = vector.shape_cast %68 : vector<2x8x72xf32> to vector<16x72xf32>
    %c3_62 = arith.constant 3 : index
    %c0_63 = arith.constant 0 : index
    %c0_64 = arith.constant 0 : index
    %70 = vector.load %arg4[%c3_62, %c0_63, %c0_64] : memref<5x72x128xf32, #tpu.memory_space<vmem>>, vector<1x72x128xf32>
    %71 = vector.shape_cast %70 : vector<1x72x128xf32> to vector<72x128xf32>
    %cst_65 = arith.constant dense<0.000000e+00> : vector<16x128xf32>
    %72 = tpu.matmul %69, %71, %cst_65 {dimension_numbers = #tpu.dot_dimension_numbers<[1], [0], [0], [1], [0, 0, 1, 1], [], []>} : vector<16x72xf32>, vector<72x128xf32>, vector<16x128xf32> -> vector<16x128xf32>
    %73 = arith.addf %67, %72 : vector<16x128xf32>
    %74 = vector.extract_strided_slice %47 {offsets = [0, 4, 0], sizes = [2, 8, 72], strides = [1, 1, 1]} : vector<2x16x72xf32> to vector<2x8x72xf32>
    %75 = vector.shape_cast %74 : vector<2x8x72xf32> to vector<16x72xf32>
    %c4_66 = arith.constant 4 : index
    %c0_67 = arith.constant 0 : index
    %c0_68 = arith.constant 0 : index
    %76 = vector.load %arg4[%c4_66, %c0_67, %c0_68] : memref<5x72x128xf32, #tpu.memory_space<vmem>>, vector<1x72x128xf32>
    %77 = vector.shape_cast %76 : vector<1x72x128xf32> to vector<72x128xf32>
    %cst_69 = arith.constant dense<0.000000e+00> : vector<16x128xf32>
    %78 = tpu.matmul %75, %77, %cst_69 {dimension_numbers = #tpu.dot_dimension_numbers<[1], [0], [0], [1], [0, 0, 1, 1], [], []>} : vector<16x72xf32>, vector<72x128xf32>, vector<16x128xf32> -> vector<16x128xf32>
    %79 = arith.addf %73, %78 : vector<16x128xf32>
    %80 = vector.broadcast %48 : vector<1x128xf32> to vector<16x128xf32>
    %81 = arith.addf %80, %79 : vector<16x128xf32>
    %cst_70 = arith.constant 0.000000e+00 : f32
    %82 = vector.broadcast %cst_70 : f32 to vector<16x128xf32>
    %83 = arith.maximumf %81, %82 : vector<16x128xf32>
    %c0_71 = arith.constant 0 : index
    %c0_72 = arith.constant 0 : index
    %c0_73 = arith.constant 0 : index
    %84 = vector.load %arg7[%c0_71, %c0_72, %c0_73] : memref<2x128x64xf32, #tpu.memory_space<vmem>>, vector<1x128x64xf32>
    %85 = vector.shape_cast %84 : vector<1x128x64xf32> to vector<128x64xf32>
    %cst_74 = arith.constant dense<0.000000e+00> : vector<16x64xf32>
    %86 = tpu.matmul %83, %85, %cst_74 {dimension_numbers = #tpu.dot_dimension_numbers<[1], [0], [0], [1], [0, 0, 1, 1], [], []>} : vector<16x128xf32>, vector<128x64xf32>, vector<16x64xf32> -> vector<16x64xf32>
    %c1_75 = arith.constant 1 : index
    %c0_76 = arith.constant 0 : index
    %c0_77 = arith.constant 0 : index
    %87 = vector.load %arg7[%c1_75, %c0_76, %c0_77] : memref<2x128x64xf32, #tpu.memory_space<vmem>>, vector<1x128x64xf32>
    %88 = vector.shape_cast %87 : vector<1x128x64xf32> to vector<128x64xf32>
    %cst_78 = arith.constant dense<0.000000e+00> : vector<16x64xf32>
    %89 = tpu.matmul %83, %88, %cst_78 {dimension_numbers = #tpu.dot_dimension_numbers<[1], [0], [0], [1], [0, 0, 1, 1], [], []>} : vector<16x128xf32>, vector<128x64xf32>, vector<16x64xf32> -> vector<16x64xf32>
    %90 = arith.maximumf %86, %89 : vector<16x64xf32>
    %c0_79 = arith.constant 0 : index
    %c0_80 = arith.constant 0 : index
    %91 = vector.load %arg16[%c0_79, %c0_80] : memref<16x64xf32, #tpu.memory_space<vmem>>, vector<16x64xf32>
    tpu.vector_store %arg16[%c0_79, %c0_80], %90 {strides = array<i32>} : memref<16x64xf32, #tpu.memory_space<vmem>>, vector<16x64xf32>,
    %c0_81 = arith.constant 0 : index
    %c0_82 = arith.constant 0 : index
    %92 = vector.load %arg9[%c0_81, %c0_82] : memref<1x128xf32, #tpu.memory_space<vmem>>, vector<1x128xf32>
    %c0_83 = arith.constant 0 : index
    %c0_84 = arith.constant 0 : index
    %93 = tpu.strided_load %arg16[%c0_83, %c0_84] {strides = array<i32: 8, 1>} : memref<16x64xf32, #tpu.memory_space<vmem>>, vector<2x64xf32>
    %c1_85 = arith.constant 1 : index
    %c0_86 = arith.constant 0 : index
    %94 = tpu.strided_load %arg16[%c1_85, %c0_86] {strides = array<i32: 8, 1>} : memref<16x64xf32, #tpu.memory_space<vmem>>, vector<2x64xf32>
    %95 = arith.maximumf %93, %94 : vector<2x64xf32>
    %c0_87 = arith.constant 0 : index
    %c0_88 = arith.constant 0 : index
    %c0_89 = arith.constant 0 : index
    %96 = vector.load %arg8[%c0_87, %c0_88, %c0_89] : memref<4x64x128xf32, #tpu.memory_space<vmem>>, vector<1x64x128xf32>
    %97 = vector.shape_cast %96 : vector<1x64x128xf32> to vector<64x128xf32>
    %cst_90 = arith.constant dense<0.000000e+00> : vector<2x128xf32>
    %98 = tpu.matmul %95, %97, %cst_90 {dimension_numbers = #tpu.dot_dimension_numbers<[1], [0], [0], [1], [0, 0, 1, 1], [], []>} : vector<2x64xf32>, vector<64x128xf32>, vector<2x128xf32> -> vector<2x128xf32>
    %99 = vector.broadcast %92 : vector<1x128xf32> to vector<2x128xf32>
    %100 = arith.addf %99, %98 : vector<2x128xf32>
    %c2_91 = arith.constant 2 : index
    %c0_92 = arith.constant 0 : index
    %101 = tpu.strided_load %arg16[%c2_91, %c0_92] {strides = array<i32: 8, 1>} : memref<16x64xf32, #tpu.memory_space<vmem>>, vector<2x64xf32>
    %c3_93 = arith.constant 3 : index
    %c0_94 = arith.constant 0 : index
    %102 = tpu.strided_load %arg16[%c3_93, %c0_94] {strides = array<i32: 8, 1>} : memref<16x64xf32, #tpu.memory_space<vmem>>, vector<2x64xf32>
    %103 = arith.maximumf %101, %102 : vector<2x64xf32>
    %c1_95 = arith.constant 1 : index
    %c0_96 = arith.constant 0 : index
    %c0_97 = arith.constant 0 : index
    %104 = vector.load %arg8[%c1_95, %c0_96, %c0_97] : memref<4x64x128xf32, #tpu.memory_space<vmem>>, vector<1x64x128xf32>
    %105 = vector.shape_cast %104 : vector<1x64x128xf32> to vector<64x128xf32>
    %cst_98 = arith.constant dense<0.000000e+00> : vector<2x128xf32>
    %106 = tpu.matmul %103, %105, %cst_98 {dimension_numbers = #tpu.dot_dimension_numbers<[1], [0], [0], [1], [0, 0, 1, 1], [], []>} : vector<2x64xf32>, vector<64x128xf32>, vector<2x128xf32> -> vector<2x128xf32>
    %107 = arith.addf %100, %106 : vector<2x128xf32>
    %c4_99 = arith.constant 4 : index
    %c0_100 = arith.constant 0 : index
    %108 = tpu.strided_load %arg16[%c4_99, %c0_100] {strides = array<i32: 8, 1>} : memref<16x64xf32, #tpu.memory_space<vmem>>, vector<2x64xf32>
    %c5 = arith.constant 5 : index
    %c0_101 = arith.constant 0 : index
    %109 = tpu.strided_load %arg16[%c5, %c0_101] {strides = array<i32: 8, 1>} : memref<16x64xf32, #tpu.memory_space<vmem>>, vector<2x64xf32>
    %110 = arith.maximumf %108, %109 : vector<2x64xf32>
    %c2_102 = arith.constant 2 : index
    %c0_103 = arith.constant 0 : index
    %c0_104 = arith.constant 0 : index
    %111 = vector.load %arg8[%c2_102, %c0_103, %c0_104] : memref<4x64x128xf32, #tpu.memory_space<vmem>>, vector<1x64x128xf32>
    %112 = vector.shape_cast %111 : vector<1x64x128xf32> to vector<64x128xf32>
    %cst_105 = arith.constant dense<0.000000e+00> : vector<2x128xf32>
    %113 = tpu.matmul %110, %112, %cst_105 {dimension_numbers = #tpu.dot_dimension_numbers<[1], [0], [0], [1], [0, 0, 1, 1], [], []>} : vector<2x64xf32>, vector<64x128xf32>, vector<2x128xf32> -> vector<2x128xf32>
    %114 = arith.addf %107, %113 : vector<2x128xf32>
    %c6 = arith.constant 6 : index
    %c0_106 = arith.constant 0 : index
    %115 = tpu.strided_load %arg16[%c6, %c0_106] {strides = array<i32: 8, 1>} : memref<16x64xf32, #tpu.memory_space<vmem>>, vector<2x64xf32>
    %c7 = arith.constant 7 : index
    %c0_107 = arith.constant 0 : index
    %116 = tpu.strided_load %arg16[%c7, %c0_107] {strides = array<i32: 8, 1>} : memref<16x64xf32, #tpu.memory_space<vmem>>, vector<2x64xf32>
    %117 = arith.maximumf %115, %116 : vector<2x64xf32>
    %c3_108 = arith.constant 3 : index
    %c0_109 = arith.constant 0 : index
    %c0_110 = arith.constant 0 : index
    %118 = vector.load %arg8[%c3_108, %c0_109, %c0_110] : memref<4x64x128xf32, #tpu.memory_space<vmem>>, vector<1x64x128xf32>
    %119 = vector.shape_cast %118 : vector<1x64x128xf32> to vector<64x128xf32>
    %cst_111 = arith.constant dense<0.000000e+00> : vector<2x128xf32>
    %120 = tpu.matmul %117, %119, %cst_111 {dimension_numbers = #tpu.dot_dimension_numbers<[1], [0], [0], [1], [0, 0, 1, 1], [], []>} : vector<2x64xf32>, vector<64x128xf32>, vector<2x128xf32> -> vector<2x128xf32>
    %121 = arith.addf %114, %120 : vector<2x128xf32>
    %cst_112 = arith.constant 0.000000e+00 : f32
    %122 = vector.broadcast %cst_112 : f32 to vector<2x128xf32>
    %123 = arith.maximumf %121, %122 : vector<2x128xf32>
    %c0_113 = arith.constant 0 : index
    %c0_114 = arith.constant 0 : index
    %124 = vector.load %arg10[%c0_113, %c0_114] : memref<128x128xf32, #tpu.memory_space<vmem>>, vector<128x128xf32>
    %cst_115 = arith.constant dense<0.000000e+00> : vector<2x128xf32>
    %125 = tpu.matmul %123, %124, %cst_115 {dimension_numbers = #tpu.dot_dimension_numbers<[1], [0], [0], [1], [0, 0, 1, 1], [], []>} : vector<2x128xf32>, vector<128x128xf32>, vector<2x128xf32> -> vector<2x128xf32>
    %c0_116 = arith.constant 0 : index
    %c0_117 = arith.constant 0 : index
    %126 = vector.load %arg11[%c0_116, %c0_117] : memref<1x128xf32, #tpu.memory_space<vmem>>, vector<1x128xf32>
    %127 = vector.broadcast %126 : vector<1x128xf32> to vector<2x128xf32>
    %128 = arith.addf %125, %127 : vector<2x128xf32>
    %cst_118 = arith.constant 0.000000e+00 : f32
    %129 = vector.broadcast %cst_118 : f32 to vector<2x128xf32>
    %130 = arith.maximumf %128, %129 : vector<2x128xf32>
    %c0_119 = arith.constant 0 : index
    %c0_120 = arith.constant 0 : index
    %131 = vector.load %arg12[%c0_119, %c0_120] : memref<128x128xf32, #tpu.memory_space<vmem>>, vector<128x128xf32>
    %cst_121 = arith.constant dense<0.000000e+00> : vector<2x128xf32>
    %132 = tpu.matmul %130, %131, %cst_121 {dimension_numbers = #tpu.dot_dimension_numbers<[1], [0], [0], [1], [0, 0, 1, 1], [], []>} : vector<2x128xf32>, vector<128x128xf32>, vector<2x128xf32> -> vector<2x128xf32>
    %c0_122 = arith.constant 0 : index
    %c0_123 = arith.constant 0 : index
    %133 = vector.load %arg13[%c0_122, %c0_123] : memref<1x128xf32, #tpu.memory_space<vmem>>, vector<1x128xf32>
    %134 = vector.broadcast %133 : vector<1x128xf32> to vector<2x128xf32>
    %135 = arith.addf %132, %134 : vector<2x128xf32>
    %c0_124 = arith.constant 0 : index
    %c0_125 = arith.constant 0 : index
    %136 = vector.load %arg14[%c0_124, %c0_125] : memref<2x128xf32, #tpu.memory_space<vmem>>, vector<2x128xf32>
    tpu.vector_store %arg14[%c0_124, %c0_125], %135 {strides = array<i32>} : memref<2x128xf32, #tpu.memory_space<vmem>>, vector<2x128xf32>,
    return
  }
  func.func @transform_0(%arg0: i32) -> (i32, i32, i32) {
    %c0_i32 = arith.constant 0 : i32
    %c0_i32_0 = arith.constant 0 : i32
    %c0_i32_1 = arith.constant 0 : i32
    return %c0_i32, %arg0, %c0_i32_0 : i32, i32, i32
  }
  func.func @transform_1(%arg0: i32) -> (i32, i32, i32) {
    %c0_i32 = arith.constant 0 : i32
    %c0_i32_0 = arith.constant 0 : i32
    %c0_i32_1 = arith.constant 0 : i32
    %c0_i32_2 = arith.constant 0 : i32
    return %c0_i32, %c0_i32_0, %c0_i32_1 : i32, i32, i32
  }
  func.func @transform_2(%arg0: i32) -> (i32, i32) {
    %c0_i32 = arith.constant 0 : i32
    %c0_i32_0 = arith.constant 0 : i32
    %c0_i32_1 = arith.constant 0 : i32
    return %c0_i32, %c0_i32_0 : i32, i32
  }
  func.func @transform_3(%arg0: i32) -> (i32, i32, i32) {
    %c0_i32 = arith.constant 0 : i32
    %c0_i32_0 = arith.constant 0 : i32
    %c0_i32_1 = arith.constant 0 : i32
    %c0_i32_2 = arith.constant 0 : i32
    return %c0_i32, %c0_i32_0, %c0_i32_1 : i32, i32, i32
  }
  func.func @transform_4(%arg0: i32) -> (i32, i32) {
    %c0_i32 = arith.constant 0 : i32
    %c0_i32_0 = arith.constant 0 : i32
    %c0_i32_1 = arith.constant 0 : i32
    return %c0_i32, %c0_i32_0 : i32, i32
  }
  func.func @transform_5(%arg0: i32) -> (i32, i32, i32) {
    %c0_i32 = arith.constant 0 : i32
    %c0_i32_0 = arith.constant 0 : i32
    %c0_i32_1 = arith.constant 0 : i32
    %c0_i32_2 = arith.constant 0 : i32
    return %c0_i32, %c0_i32_0, %c0_i32_1 : i32, i32, i32
  }
  func.func @transform_6(%arg0: i32) -> (i32, i32, i32) {
    %c0_i32 = arith.constant 0 : i32
    %c0_i32_0 = arith.constant 0 : i32
    %c0_i32_1 = arith.constant 0 : i32
    %c0_i32_2 = arith.constant 0 : i32
    return %c0_i32, %c0_i32_0, %c0_i32_1 : i32, i32, i32
  }
  func.func @transform_7(%arg0: i32) -> (i32, i32, i32) {
    %c0_i32 = arith.constant 0 : i32
    %c0_i32_0 = arith.constant 0 : i32
    %c0_i32_1 = arith.constant 0 : i32
    %c0_i32_2 = arith.constant 0 : i32
    return %c0_i32, %c0_i32_0, %c0_i32_1 : i32, i32, i32
  }
  func.func @transform_8(%arg0: i32) -> (i32, i32) {
    %c0_i32 = arith.constant 0 : i32
    %c0_i32_0 = arith.constant 0 : i32
    %c0_i32_1 = arith.constant 0 : i32
    return %c0_i32, %c0_i32_0 : i32, i32
  }
  func.func @transform_9(%arg0: i32) -> (i32, i32) {
    %c0_i32 = arith.constant 0 : i32
    %c0_i32_0 = arith.constant 0 : i32
    %c0_i32_1 = arith.constant 0 : i32
    return %c0_i32, %c0_i32_0 : i32, i32
  }
  func.func @transform_10(%arg0: i32) -> (i32, i32) {
    %c0_i32 = arith.constant 0 : i32
    %c0_i32_0 = arith.constant 0 : i32
    %c0_i32_1 = arith.constant 0 : i32
    return %c0_i32, %c0_i32_0 : i32, i32
  }
  func.func @transform_11(%arg0: i32) -> (i32, i32) {
    %c0_i32 = arith.constant 0 : i32
    %c0_i32_0 = arith.constant 0 : i32
    %c0_i32_1 = arith.constant 0 : i32
    return %c0_i32, %c0_i32_0 : i32, i32
  }
  func.func @transform_12(%arg0: i32) -> (i32, i32) {
    %c0_i32 = arith.constant 0 : i32
    %c0_i32_0 = arith.constant 0 : i32
    %c0_i32_1 = arith.constant 0 : i32
    return %c0_i32, %c0_i32_0 : i32, i32
  }
  func.func @transform_13(%arg0: i32) -> (i32, i32) {
    %c0_i32 = arith.constant 0 : i32
    %c0_i32_0 = arith.constant 0 : i32
    return %arg0, %c0_i32 : i32, i32
  }
}

</mosaic_0001>

<llo_original>
// kernel: lenet_forward.1
$region0: #{lenet_forward.1}
  #allocation0 [shape = 'u32[]', space=smem, size = 0x4, offset = 0x4, fixed_abs, tag = 'smem constant byte address 0x4 - core index']
  #allocation1 [shape = 'u32[72,128]{1,0:T(1,128)}', space=vmem, size = 0x9000, scoped, tag = 'internal scratch']
  #allocation2 [shape = 'f32[64,72]{1,0:T(8,128)}', space=vmem, size = 0x8000, scoped, tag = 'scratch operand']
  #allocation3 [shape = 'f32[16,64]{1,0:T(8,128)}', space=vmem, size = 0x2000, scoped, tag = 'scratch operand']
  %s0 = inlined_call_operand.vmem [shape: f32[5,64,28], index: 0, kind: input, shape index: {}]
  %s1 = inlined_call_operand.vmem [shape: f32[5,28,144], index: 1, kind: input, shape index: {}]
  %s2 = inlined_call_operand.vmem [shape: f32[1,144], index: 2, kind: input, shape index: {}]
  %s3 = inlined_call_operand.vmem [shape: f32[5,72,128], index: 3, kind: input, shape index: {}]
  %s4 = inlined_call_operand.vmem [shape: f32[1,128], index: 4, kind: input, shape index: {}]
  %s5 = inlined_call_operand.vmem [shape: f32[2,144,72], index: 5, kind: input, shape index: {}]
  %s6 = inlined_call_operand.vmem [shape: f32[2,128,64], index: 6, kind: input, shape index: {}]
  %s7 = inlined_call_operand.vmem [shape: f32[4,64,128], index: 7, kind: input, shape index: {}]
  %s8 = inlined_call_operand.vmem [shape: f32[1,128], index: 8, kind: input, shape index: {}]
  %s9 = inlined_call_operand.vmem [shape: f32[128,128], index: 9, kind: input, shape index: {}]
  %s10 = inlined_call_operand.vmem [shape: f32[1,128], index: 10, kind: input, shape index: {}]
  %s11 = inlined_call_operand.vmem [shape: f32[128,128], index: 11, kind: input, shape index: {}]
  %s12 = inlined_call_operand.vmem [shape: f32[1,128], index: 12, kind: input, shape index: {}]
  %s13 = inlined_call_operand.hbm [shape: f32[2,128], index: 13, kind: output, shape index: {}]
  %s14 = sld [smem:[#allocation0]]
  $region62: #{lenet_forward.1} parent=0
    _
  %s16 = ssub.s32 1, %s14
  %s17 = scalar_select 0, %s16, %s14
  $region1: #{lenet_forward.1} parent=0
    #allocation4 [shape = 'u8[1024]{0}', space=vmem, size = 0x400, scoped, tag = 'output window, operand 0, single buffered']
    #allocation5 [shape = 's32[1]{0}', space=sflag, size = 0x4, scoped, tag = 'scoped memory for lenet_forward.1']
    %18 = vsyncpa [#allocation5], 0
    // Predicated region
    $region2: #{lenet_forward.1} parent=1 // pred_check
      _
    $region3: #{lenet_forward.1} parent=1 // pred_check_branch
      %20 = sbr.rel (0) target = $region5
    $region4: #{lenet_forward.1} parent=1 // pred_region
      _
    $region5: #{lenet_forward.1} parent=1 // pred_fallthru
      _
    // Predicated region
    $region6: #{lenet_forward.1} parent=1 // pred_check
      _
    $region7: #{lenet_forward.1} parent=1 // pred_check_branch
      %22 = sbr.rel (0) target = $region9
    $region8: #{lenet_forward.1} parent=1 // pred_region
      _
    $region9: #{lenet_forward.1} parent=1 // pred_fallthru
      _
    // Predicated region
    $region10: #{lenet_forward.1} parent=1 // pred_check
      _
    $region11: #{lenet_forward.1} parent=1 // pred_check_branch
      %24 = sbr.rel (0) target = $region13
    $region12: #{lenet_forward.1} parent=1 // pred_region
      _
    $region13: #{lenet_forward.1} parent=1 // pred_fallthru
      _
    // Predicated region
    $region14: #{lenet_forward.1} parent=1 // pred_check
      _
    $region15: #{lenet_forward.1} parent=1 // pred_check_branch
      %26 = sbr.rel (0) target = $region17
    $region16: #{lenet_forward.1} parent=1 // pred_region
      _
    $region17: #{lenet_forward.1} parent=1 // pred_fallthru
      _
    // Predicated region
    $region18: #{lenet_forward.1} parent=1 // pred_check
      _
    $region19: #{lenet_forward.1} parent=1 // pred_check_branch
      %28 = sbr.rel (0) target = $region21
    $region20: #{lenet_forward.1} parent=1 // pred_region
      _
    $region21: #{lenet_forward.1} parent=1 // pred_fallthru
      _
    // Predicated region
    $region22: #{lenet_forward.1} parent=1 // pred_check
      _
    $region23: #{lenet_forward.1} parent=1 // pred_check_branch
      %30 = sbr.rel (0) target = $region25
    $region24: #{lenet_forward.1} parent=1 // pred_region
      _
    $region25: #{lenet_forward.1} parent=1 // pred_fallthru
      _
    // Predicated region
    $region26: #{lenet_forward.1} parent=1 // pred_check
      _
    $region27: #{lenet_forward.1} parent=1 // pred_check_branch
      %32 = sbr.rel (0) target = $region29
    $region28: #{lenet_forward.1} parent=1 // pred_region
      _
    $region29: #{lenet_forward.1} parent=1 // pred_fallthru
      _
    // Predicated region
    $region30: #{lenet_forward.1} parent=1 // pred_check
      _
    $region31: #{lenet_forward.1} parent=1 // pred_check_branch
      %34 = sbr.rel (0) target = $region33
    $region32: #{lenet_forward.1} parent=1 // pred_region
      _
    $region33: #{lenet_forward.1} parent=1 // pred_fallthru
      _
    // Predicated region
    $region34: #{lenet_forward.1} parent=1 // pred_check
      _
    $region35: #{lenet_forward.1} parent=1 // pred_check_branch
      %36 = sbr.rel (0) target = $region37
    $region36: #{lenet_forward.1} parent=1 // pred_region
      _
    $region37: #{lenet_forward.1} parent=1 // pred_fallthru
      _
    // Predicated region
    $region38: #{lenet_forward.1} parent=1 // pred_check
      _
    $region39: #{lenet_forward.1} parent=1 // pred_check_branch
      %38 = sbr.rel (0) target = $region41
    $region40: #{lenet_forward.1} parent=1 // pred_region
      _
    $region41: #{lenet_forward.1} parent=1 // pred_fallthru
      _
    // Predicated region
    $region42: #{lenet_forward.1} parent=1 // pred_check
      _
    $region43: #{lenet_forward.1} parent=1 // pred_check_branch
      %40 = sbr.rel (0) target = $region45
    $region44: #{lenet_forward.1} parent=1 // pred_region
      _
    $region45: #{lenet_forward.1} parent=1 // pred_fallthru
      _
    // Predicated region
    $region46: #{lenet_forward.1} parent=1 // pred_check
      _
    $region47: #{lenet_forward.1} parent=1 // pred_check_branch
      %42 = sbr.rel (0) target = $region49
    $region48: #{lenet_forward.1} parent=1 // pred_region
      _
    $region49: #{lenet_forward.1} parent=1 // pred_fallthru
      _
    // Predicated region
    $region50: #{lenet_forward.1} parent=1 // pred_check
      _
    $region51: #{lenet_forward.1} parent=1 // pred_check_branch
      %44 = sbr.rel (0) target = $region53
    $region52: #{lenet_forward.1} parent=1 // pred_region
      _
    $region53: #{lenet_forward.1} parent=1 // pred_fallthru
      _
    %v45 = vld [vmem:[%s2] sm:$0x3]
    %v46 = vld [vmem:[%s0] sm:$0xff]
    %v47 = vld [vmem:[%s0 + $0x8] sm:$0xff]
    %v48 = vld [vmem:[%s0 + $0x10] sm:$0xff]
    %v49 = vld [vmem:[%s0 + $0x18] sm:$0xff]
    %v50 = vld [vmem:[%s0 + $0x20] sm:$0xff]
    %v51 = vld [vmem:[%s0 + $0x28] sm:$0xff]
    %v52 = vld [vmem:[%s0 + $0x30] sm:$0xff]
    %v53 = vld [vmem:[%s0 + $0x38] sm:$0xff]
    %v54 = vld [vmem:[%s1] sm:$0xff]
    %v55 = vld [vmem:[%s1 + $0x8] sm:$0xff]
    %v56 = vld [vmem:[%s1 + $0x10] sm:$0xff]
    %v57 = vld [vmem:[%s1 + $0x18] sm:$0xff]
    %v58 = vld [vmem:[%s1 + $0x20] sm:$0xff]
    %v59 = vld [vmem:[%s1 + $0x28] sm:$0xff]
    %v60 = vld [vmem:[%s1 + $0x30] sm:$0xf]
    %v61 = vld [vmem:[%s1 + $0x38] sm:$0xf]
    %s62 = scalar_lea.vmem %s0, 64
    %v63 = vld [vmem:[%s62] sm:$0xff]
    %v64 = vld [vmem:[%s62 + $0x8] sm:$0xff]
    %v65 = vld [vmem:[%s62 + $0x10] sm:$0xff]
    %v66 = vld [vmem:[%s62 + $0x18] sm:$0xff]
    %v67 = vld [vmem:[%s62 + $0x20] sm:$0xff]
    %v68 = vld [vmem:[%s62 + $0x28] sm:$0xff]
    %v69 = vld [vmem:[%s62 + $0x30] sm:$0xff]
    %v70 = vld [vmem:[%s62 + $0x38] sm:$0xff]
    %s71 = scalar_lea.vmem %s1, 64
    %v72 = vld [vmem:[%s71] sm:$0xff]
    %v73 = vld [vmem:[%s71 + $0x8] sm:$0xff]
    %v74 = vld [vmem:[%s71 + $0x10] sm:$0xff]
    %v75 = vld [vmem:[%s71 + $0x18] sm:$0xff]
    %v76 = vld [vmem:[%s71 + $0x20] sm:$0xff]
    %v77 = vld [vmem:[%s71 + $0x28] sm:$0xff]
    %v78 = vld [vmem:[%s71 + $0x30] sm:$0xf]
    %v79 = vld [vmem:[%s71 + $0x38] sm:$0xf]
    %vm80 = vcmask 228352
    %v82 = vsel %vm80, %v63, 0
    %v85 = vsel %vm80, %v64, 0
    %v88 = vsel %vm80, %v65, 0
    %v91 = vsel %vm80, %v66, 0
    %v94 = vsel %vm80, %v67, 0
    %v97 = vsel %vm80, %v68, 0
    %v100 = vsel %vm80, %v69, 0
    %v103 = vsel %vm80, %v70, 0
    %vm105 = vcmask 1043456
    %v107 = vsel %vm105, %v78, 0
    %v110 = vsel %vm105, %v79, 0
    %112 = vmatpush.msra.mxu0 0.0
    %113 = vmatpush.msra.mxu0 0.0
    %114 = vmatpush.msra.mxu0 0.0
    %115 = vmatpush.msra.mxu0 0.0
    %116 = vmatpush.msra.mxu0 0.0
    %117 = vmatpush.msra.mxu0 0.0
    %118 = vmatpush.msra.mxu0 0.0
    %119 = vmatpush.msra.mxu0 0.0
    %120 = vmatpush.msra.mxu0 0.0
    %121 = vmatpush.msra.mxu0 0.0
    %122 = vmatpush.msra.mxu0 0.0
    %123 = vmatpush.msra.mxu0 0.0
    %124 = vmatpush.msra.mxu0 %v107
    %125 = vmatpush.msra.mxu0 %v76
    %126 = vmatpush.msra.mxu0 %v74
    %127 = vmatpush.msra.mxu0 %v72
    %128 = vmatmul.f32.gmra.mxu0 %v82
    %v129 = vpop.f32.mrf.mxu0
    %v130 = vadd.f32 0.0, %v129
    %131 = vmatmul.f32.gmra.mxu0 %v85
    %v132 = vpop.f32.mrf.mxu0
    %v133 = vadd.f32 0.0, %v132
    %134 = vmatmul.f32.gmra.mxu0 %v88
    %v135 = vpop.f32.mrf.mxu0
    %v136 = vadd.f32 0.0, %v135
    %137 = vmatmul.f32.gmra.mxu0 %v91
    %v138 = vpop.f32.mrf.mxu0
    %v139 = vadd.f32 0.0, %v138
    %140 = vmatmul.f32.gmra.mxu0 %v94
    %v141 = vpop.f32.mrf.mxu0
    %v142 = vadd.f32 0.0, %v141
    %143 = vmatmul.f32.gmra.mxu0 %v97
    %v144 = vpop.f32.mrf.mxu0
    %v145 = vadd.f32 0.0, %v144
    %146 = vmatmul.f32.gmra.mxu0 %v100
    %v147 = vpop.f32.mrf.mxu0
    %v148 = vadd.f32 0.0, %v147
    %149 = vmatmul.f32.gmra.mxu0 %v103
    %v150 = vpop.f32.mrf.mxu0
    %v151 = vadd.f32 0.0, %v150
    %152 = vdwg.mxu0
    %153 = vmatpush.msra.mxu0 0.0
    %154 = vmatpush.msra.mxu0 0.0
    %155 = vmatpush.msra.mxu0 0.0
    %156 = vmatpush.msra.mxu0 0.0
    %157 = vmatpush.msra.mxu0 0.0
    %158 = vmatpush.msra.mxu0 0.0
    %159 = vmatpush.msra.mxu0 0.0
    %160 = vmatpush.msra.mxu0 0.0
    %161 = vmatpush.msra.mxu0 0.0
    %162 = vmatpush.msra.mxu0 0.0
    %163 = vmatpush.msra.mxu0 0.0
    %164 = vmatpush.msra.mxu0 0.0
    %165 = vmatpush.msra.mxu0 %v110
    %166 = vmatpush.msra.mxu0 %v77
    %167 = vmatpush.msra.mxu0 %v75
    %168 = vmatpush.msra.mxu0 %v73
    %169 = vmatmul.f32.gmra.mxu0 %v82
    %v170 = vpop.f32.mrf.mxu0
    %v171 = vadd.f32 0.0, %v170
    %172 = vmatmul.f32.gmra.mxu0 %v85
    %v173 = vpop.f32.mrf.mxu0
    %v174 = vadd.f32 0.0, %v173
    %175 = vmatmul.f32.gmra.mxu0 %v88
    %v176 = vpop.f32.mrf.mxu0
    %v177 = vadd.f32 0.0, %v176
    %178 = vmatmul.f32.gmra.mxu0 %v91
    %v179 = vpop.f32.mrf.mxu0
    %v180 = vadd.f32 0.0, %v179
    %181 = vmatmul.f32.gmra.mxu0 %v94
    %v182 = vpop.f32.mrf.mxu0
    %v183 = vadd.f32 0.0, %v182
    %184 = vmatmul.f32.gmra.mxu0 %v97
    %v185 = vpop.f32.mrf.mxu0
    %v186 = vadd.f32 0.0, %v185
    %187 = vmatmul.f32.gmra.mxu0 %v100
    %v188 = vpop.f32.mrf.mxu0
    %v189 = vadd.f32 0.0, %v188
    %190 = vmatmul.f32.gmra.mxu0 %v103
    %v191 = vpop.f32.mrf.mxu0
    %v192 = vadd.f32 0.0, %v191
    %193 = vdwg.mxu0
    %v195 = vsel %vm80, %v46, 0
    %v198 = vsel %vm80, %v47, 0
    %v201 = vsel %vm80, %v48, 0
    %v204 = vsel %vm80, %v49, 0
    %v207 = vsel %vm80, %v50, 0
    %v210 = vsel %vm80, %v51, 0
    %v213 = vsel %vm80, %v52, 0
    %v216 = vsel %vm80, %v53, 0
    %v219 = vsel %vm105, %v60, 0
    %v222 = vsel %vm105, %v61, 0
    %224 = vmatpush.msra.mxu0 0.0
    %225 = vmatpush.msra.mxu0 0.0
    %226 = vmatpush.msra.mxu0 0.0
    %227 = vmatpush.msra.mxu0 0.0
    %228 = vmatpush.msra.mxu0 0.0
    %229 = vmatpush.msra.mxu0 0.0
    %230 = vmatpush.msra.mxu0 0.0
    %231 = vmatpush.msra.mxu0 0.0
    %232 = vmatpush.msra.mxu0 0.0
    %233 = vmatpush.msra.mxu0 0.0
    %234 = vmatpush.msra.mxu0 0.0
    %235 = vmatpush.msra.mxu0 0.0
    %236 = vmatpush.msra.mxu0 %v219
    %237 = vmatpush.msra.mxu0 %v58
    %238 = vmatpush.msra.mxu0 %v56
    %239 = vmatpush.msra.mxu0 %v54
    %240 = vmatmul.f32.gmra.mxu0 %v195
    %v241 = vpop.f32.mrf.mxu0
    %v242 = vadd.f32 %v130, %v241
    %243 = vmatmul.f32.gmra.mxu0 %v198
    %v244 = vpop.f32.mrf.mxu0
    %v245 = vadd.f32 %v133, %v244
    %246 = vmatmul.f32.gmra.mxu0 %v201
    %v247 = vpop.f32.mrf.mxu0
    %v248 = vadd.f32 %v136, %v247
    %249 = vmatmul.f32.gmra.mxu0 %v204
    %v250 = vpop.f32.mrf.mxu0
    %v251 = vadd.f32 %v139, %v250
    %252 = vmatmul.f32.gmra.mxu0 %v207
    %v253 = vpop.f32.mrf.mxu0
    %v254 = vadd.f32 %v142, %v253
    %255 = vmatmul.f32.gmra.mxu0 %v210
    %v256 = vpop.f32.mrf.mxu0
    %v257 = vadd.f32 %v145, %v256
    %258 = vmatmul.f32.gmra.mxu0 %v213
    %v259 = vpop.f32.mrf.mxu0
    %v260 = vadd.f32 %v148, %v259
    %261 = vmatmul.f32.gmra.mxu0 %v216
    %v262 = vpop.f32.mrf.mxu0
    %v263 = vadd.f32 %v151, %v262
    %264 = vdwg.mxu0
    %265 = vmatpush.msra.mxu0 0.0
    %266 = vmatpush.msra.mxu0 0.0
    %267 = vmatpush.msra.mxu0 0.0
    %268 = vmatpush.msra.mxu0 0.0
    %269 = vmatpush.msra.mxu0 0.0
    %270 = vmatpush.msra.mxu0 0.0
    %271 = vmatpush.msra.mxu0 0.0
    %272 = vmatpush.msra.mxu0 0.0
    %273 = vmatpush.msra.mxu0 0.0
    %274 = vmatpush.msra.mxu0 0.0
    %275 = vmatpush.msra.mxu0 0.0
    %276 = vmatpush.msra.mxu0 0.0
    %277 = vmatpush.msra.mxu0 %v222
    %278 = vmatpush.msra.mxu0 %v59
    %279 = vmatpush.msra.mxu0 %v57
    %280 = vmatpush.msra.mxu0 %v55
    %281 = vmatmul.f32.gmra.mxu0 %v195
    %v282 = vpop.f32.mrf.mxu0
    %v283 = vadd.f32 %v171, %v282
    %284 = vmatmul.f32.gmra.mxu0 %v198
    %v285 = vpop.f32.mrf.mxu0
    %v286 = vadd.f32 %v174, %v285
    %287 = vmatmul.f32.gmra.mxu0 %v201
    %v288 = vpop.f32.mrf.mxu0
    %v289 = vadd.f32 %v177, %v288
    %290 = vmatmul.f32.gmra.mxu0 %v204
    %v291 = vpop.f32.mrf.mxu0
    %v292 = vadd.f32 %v180, %v291
    %293 = vmatmul.f32.gmra.mxu0 %v207
    %v294 = vpop.f32.mrf.mxu0
    %v295 = vadd.f32 %v183, %v294
    %296 = vmatmul.f32.gmra.mxu0 %v210
    %v297 = vpop.f32.mrf.mxu0
    %v298 = vadd.f32 %v186, %v297
    %299 = vmatmul.f32.gmra.mxu0 %v213
    %v300 = vpop.f32.mrf.mxu0
    %v301 = vadd.f32 %v189, %v300
    %302 = vmatmul.f32.gmra.mxu0 %v216
    %v303 = vpop.f32.mrf.mxu0
    %v304 = vadd.f32 %v192, %v303
    %305 = vdwg.mxu0
    %s306 = scalar_lea.vmem %s0, 128
    %v307 = vld [vmem:[%s306] sm:$0xff]
    %v308 = vld [vmem:[%s306 + $0x8] sm:$0xff]
    %v309 = vld [vmem:[%s306 + $0x10] sm:$0xff]
    %v310 = vld [vmem:[%s306 + $0x18] sm:$0xff]
    %v311 = vld [vmem:[%s306 + $0x20] sm:$0xff]
    %v312 = vld [vmem:[%s306 + $0x28] sm:$0xff]
    %v313 = vld [vmem:[%s306 + $0x30] sm:$0xff]
    %v314 = vld [vmem:[%s306 + $0x38] sm:$0xff]
    %s315 = scalar_lea.vmem %s1, 128
    %v316 = vld [vmem:[%s315] sm:$0xff]
    %v317 = vld [vmem:[%s315 + $0x8] sm:$0xff]
    %v318 = vld [vmem:[%s315 + $0x10] sm:$0xff]
    %v319 = vld [vmem:[%s315 + $0x18] sm:$0xff]
    %v320 = vld [vmem:[%s315 + $0x20] sm:$0xff]
    %v321 = vld [vmem:[%s315 + $0x28] sm:$0xff]
    %v322 = vld [vmem:[%s315 + $0x30] sm:$0xf]
    %v323 = vld [vmem:[%s315 + $0x38] sm:$0xf]
    %v325 = vsel %vm80, %v307, 0
    %v328 = vsel %vm80, %v308, 0
    %v331 = vsel %vm80, %v309, 0
    %v334 = vsel %vm80, %v310, 0
    %v337 = vsel %vm80, %v311, 0
    %v340 = vsel %vm80, %v312, 0
    %v343 = vsel %vm80, %v313, 0
    %v346 = vsel %vm80, %v314, 0
    %v349 = vsel %vm105, %v322, 0
    %v352 = vsel %vm105, %v323, 0
    %354 = vmatpush.msra.mxu0 0.0
    %355 = vmatpush.msra.mxu0 0.0
    %356 = vmatpush.msra.mxu0 0.0
    %357 = vmatpush.msra.mxu0 0.0
    %358 = vmatpush.msra.mxu0 0.0
    %359 = vmatpush.msra.mxu0 0.0
    %360 = vmatpush.msra.mxu0 0.0
    %361 = vmatpush.msra.mxu0 0.0
    %362 = vmatpush.msra.mxu0 0.0
    %363 = vmatpush.msra.mxu0 0.0
    %364 = vmatpush.msra.mxu0 0.0
    %365 = vmatpush.msra.mxu0 0.0
    %366 = vmatpush.msra.mxu0 %v349
    %367 = vmatpush.msra.mxu0 %v320
    %368 = vmatpush.msra.mxu0 %v318
    %369 = vmatpush.msra.mxu0 %v316
    %370 = vmatmul.f32.gmra.mxu0 %v325
    %v371 = vpop.f32.mrf.mxu0
    %v372 = vadd.f32 0.0, %v371
    %373 = vmatmul.f32.gmra.mxu0 %v328
    %v374 = vpop.f32.mrf.mxu0
    %v375 = vadd.f32 0.0, %v374
    %376 = vmatmul.f32.gmra.mxu0 %v331
    %v377 = vpop.f32.mrf.mxu0
    %v378 = vadd.f32 0.0, %v377
    %379 = vmatmul.f32.gmra.mxu0 %v334
    %v380 = vpop.f32.mrf.mxu0
    %v381 = vadd.f32 0.0, %v380
    %382 = vmatmul.f32.gmra.mxu0 %v337
    %v383 = vpop.f32.mrf.mxu0
    %v384 = vadd.f32 0.0, %v383
    %385 = vmatmul.f32.gmra.mxu0 %v340
    %v386 = vpop.f32.mrf.mxu0
    %v387 = vadd.f32 0.0, %v386
    %388 = vmatmul.f32.gmra.mxu0 %v343
    %v389 = vpop.f32.mrf.mxu0
    %v390 = vadd.f32 0.0, %v389
    %391 = vmatmul.f32.gmra.mxu0 %v346
    %v392 = vpop.f32.mrf.mxu0
    %v393 = vadd.f32 0.0, %v392
    %394 = vdwg.mxu0
    %395 = vmatpush.msra.mxu0 0.0
    %396 = vmatpush.msra.mxu0 0.0
    %397 = vmatpush.msra.mxu0 0.0
    %398 = vmatpush.msra.mxu0 0.0
    %399 = vmatpush.msra.mxu0 0.0
    %400 = vmatpush.msra.mxu0 0.0
    %401 = vmatpush.msra.mxu0 0.0
    %402 = vmatpush.msra.mxu0 0.0
    %403 = vmatpush.msra.mxu0 0.0
    %404 = vmatpush.msra.mxu0 0.0
    %405 = vmatpush.msra.mxu0 0.0
    %406 = vmatpush.msra.mxu0 0.0
    %407 = vmatpush.msra.mxu0 %v352
    %408 = vmatpush.msra.mxu0 %v321
    %409 = vmatpush.msra.mxu0 %v319
    %410 = vmatpush.msra.mxu0 %v317
    %411 = vmatmul.f32.gmra.mxu0 %v325
    %v412 = vpop.f32.mrf.mxu0
    %v413 = vadd.f32 0.0, %v412
    %414 = vmatmul.f32.gmra.mxu0 %v328
    %v415 = vpop.f32.mrf.mxu0
    %v416 = vadd.f32 0.0, %v415
    %417 = vmatmul.f32.gmra.mxu0 %v331
    %v418 = vpop.f32.mrf.mxu0
    %v419 = vadd.f32 0.0, %v418
    %420 = vmatmul.f32.gmra.mxu0 %v334
    %v421 = vpop.f32.mrf.mxu0
    %v422 = vadd.f32 0.0, %v421
    %423 = vmatmul.f32.gmra.mxu0 %v337
    %v424 = vpop.f32.mrf.mxu0
    %v425 = vadd.f32 0.0, %v424
    %426 = vmatmul.f32.gmra.mxu0 %v340
    %v427 = vpop.f32.mrf.mxu0
    %v428 = vadd.f32 0.0, %v427
    %429 = vmatmul.f32.gmra.mxu0 %v343
    %v430 = vpop.f32.mrf.mxu0
    %v431 = vadd.f32 0.0, %v430
    %432 = vmatmul.f32.gmra.mxu0 %v346
    %v433 = vpop.f32.mrf.mxu0
    %v434 = vadd.f32 0.0, %v433
    %435 = vdwg.mxu0
    %v436 = vadd.f32 %v242, %v372
    %v437 = vadd.f32 %v283, %v413
    %v438 = vadd.f32 %v245, %v375
    %v439 = vadd.f32 %v286, %v416
    %v440 = vadd.f32 %v248, %v378
    %v441 = vadd.f32 %v289, %v419
    %v442 = vadd.f32 %v251, %v381
    %v443 = vadd.f32 %v292, %v422
    %v444 = vadd.f32 %v254, %v384
    %v445 = vadd.f32 %v295, %v425
    %v446 = vadd.f32 %v257, %v387
    %v447 = vadd.f32 %v298, %v428
    %v448 = vadd.f32 %v260, %v390
    %v449 = vadd.f32 %v301, %v431
    %v450 = vadd.f32 %v263, %v393
    %v451 = vadd.f32 %v304, %v434
    %s452 = scalar_lea.vmem %s0, 192
    %v453 = vld [vmem:[%s452] sm:$0xff]
    %v454 = vld [vmem:[%s452 + $0x8] sm:$0xff]
    %v455 = vld [vmem:[%s452 + $0x10] sm:$0xff]
    %v456 = vld [vmem:[%s452 + $0x18] sm:$0xff]
    %v457 = vld [vmem:[%s452 + $0x20] sm:$0xff]
    %v458 = vld [vmem:[%s452 + $0x28] sm:$0xff]
    %v459 = vld [vmem:[%s452 + $0x30] sm:$0xff]
    %v460 = vld [vmem:[%s452 + $0x38] sm:$0xff]
    %s461 = scalar_lea.vmem %s1, 192
    %v462 = vld [vmem:[%s461] sm:$0xff]
    %v463 = vld [vmem:[%s461 + $0x8] sm:$0xff]
    %v464 = vld [vmem:[%s461 + $0x10] sm:$0xff]
    %v465 = vld [vmem:[%s461 + $0x18] sm:$0xff]
    %v466 = vld [vmem:[%s461 + $0x20] sm:$0xff]
    %v467 = vld [vmem:[%s461 + $0x28] sm:$0xff]
    %v468 = vld [vmem:[%s461 + $0x30] sm:$0xf]
    %v469 = vld [vmem:[%s461 + $0x38] sm:$0xf]
    %v471 = vsel %vm80, %v453, 0
    %v474 = vsel %vm80, %v454, 0
    %v477 = vsel %vm80, %v455, 0
    %v480 = vsel %vm80, %v456, 0
    %v483 = vsel %vm80, %v457, 0
    %v486 = vsel %vm80, %v458, 0
    %v489 = vsel %vm80, %v459, 0
    %v492 = vsel %vm80, %v460, 0
    %v495 = vsel %vm105, %v468, 0
    %v498 = vsel %vm105, %v469, 0
    %500 = vmatpush.msra.mxu0 0.0
    %501 = vmatpush.msra.mxu0 0.0
    %502 = vmatpush.msra.mxu0 0.0
    %503 = vmatpush.msra.mxu0 0.0
    %504 = vmatpush.msra.mxu0 0.0
    %505 = vmatpush.msra.mxu0 0.0
    %506 = vmatpush.msra.mxu0 0.0
    %507 = vmatpush.msra.mxu0 0.0
    %508 = vmatpush.msra.mxu0 0.0
    %509 = vmatpush.msra.mxu0 0.0
    %510 = vmatpush.msra.mxu0 0.0
    %511 = vmatpush.msra.mxu0 0.0
    %512 = vmatpush.msra.mxu0 %v495
    %513 = vmatpush.msra.mxu0 %v466
    %514 = vmatpush.msra.mxu0 %v464
    %515 = vmatpush.msra.mxu0 %v462
    %516 = vmatmul.f32.gmra.mxu0 %v471
    %v517 = vpop.f32.mrf.mxu0
    %v518 = vadd.f32 0.0, %v517
    %519 = vmatmul.f32.gmra.mxu0 %v474
    %v520 = vpop.f32.mrf.mxu0
    %v521 = vadd.f32 0.0, %v520
    %522 = vmatmul.f32.gmra.mxu0 %v477
    %v523 = vpop.f32.mrf.mxu0
    %v524 = vadd.f32 0.0, %v523
    %525 = vmatmul.f32.gmra.mxu0 %v480
    %v526 = vpop.f32.mrf.mxu0
    %v527 = vadd.f32 0.0, %v526
    %528 = vmatmul.f32.gmra.mxu0 %v483
    %v529 = vpop.f32.mrf.mxu0
    %v530 = vadd.f32 0.0, %v529
    %531 = vmatmul.f32.gmra.mxu0 %v486
    %v532 = vpop.f32.mrf.mxu0
    %v533 = vadd.f32 0.0, %v532
    %534 = vmatmul.f32.gmra.mxu0 %v489
    %v535 = vpop.f32.mrf.mxu0
    %v536 = vadd.f32 0.0, %v535
    %537 = vmatmul.f32.gmra.mxu0 %v492
    %v538 = vpop.f32.mrf.mxu0
    %v539 = vadd.f32 0.0, %v538
    %540 = vdwg.mxu0
    %541 = vmatpush.msra.mxu0 0.0
    %542 = vmatpush.msra.mxu0 0.0
    %543 = vmatpush.msra.mxu0 0.0
    %544 = vmatpush.msra.mxu0 0.0
    %545 = vmatpush.msra.mxu0 0.0
    %546 = vmatpush.msra.mxu0 0.0
    %547 = vmatpush.msra.mxu0 0.0
    %548 = vmatpush.msra.mxu0 0.0
    %549 = vmatpush.msra.mxu0 0.0
    %550 = vmatpush.msra.mxu0 0.0
    %551 = vmatpush.msra.mxu0 0.0
    %552 = vmatpush.msra.mxu0 0.0
    %553 = vmatpush.msra.mxu0 %v498
    %554 = vmatpush.msra.mxu0 %v467
    %555 = vmatpush.msra.mxu0 %v465
    %556 = vmatpush.msra.mxu0 %v463
    %557 = vmatmul.f32.gmra.mxu0 %v471
    %v558 = vpop.f32.mrf.mxu0
    %v559 = vadd.f32 0.0, %v558
    %560 = vmatmul.f32.gmra.mxu0 %v474
    %v561 = vpop.f32.mrf.mxu0
    %v562 = vadd.f32 0.0, %v561
    %563 = vmatmul.f32.gmra.mxu0 %v477
    %v564 = vpop.f32.mrf.mxu0
    %v565 = vadd.f32 0.0, %v564
    %566 = vmatmul.f32.gmra.mxu0 %v480
    %v567 = vpop.f32.mrf.mxu0
    %v568 = vadd.f32 0.0, %v567
    %569 = vmatmul.f32.gmra.mxu0 %v483
    %v570 = vpop.f32.mrf.mxu0
    %v571 = vadd.f32 0.0, %v570
    %572 = vmatmul.f32.gmra.mxu0 %v486
    %v573 = vpop.f32.mrf.mxu0
    %v574 = vadd.f32 0.0, %v573
    %575 = vmatmul.f32.gmra.mxu0 %v489
    %v576 = vpop.f32.mrf.mxu0
    %v577 = vadd.f32 0.0, %v576
    %578 = vmatmul.f32.gmra.mxu0 %v492
    %v579 = vpop.f32.mrf.mxu0
    %v580 = vadd.f32 0.0, %v579
    %581 = vdwg.mxu0
    %v582 = vadd.f32 %v436, %v518
    %v583 = vadd.f32 %v437, %v559
    %v584 = vadd.f32 %v438, %v521
    %v585 = vadd.f32 %v439, %v562
    %v586 = vadd.f32 %v440, %v524
    %v587 = vadd.f32 %v441, %v565
    %v588 = vadd.f32 %v442, %v527
    %v589 = vadd.f32 %v443, %v568
    %v590 = vadd.f32 %v444, %v530
    %v591 = vadd.f32 %v445, %v571
    %v592 = vadd.f32 %v446, %v533
    %v593 = vadd.f32 %v447, %v574
    %v594 = vadd.f32 %v448, %v536
    %v595 = vadd.f32 %v449, %v577
    %v596 = vadd.f32 %v450, %v539
    %v597 = vadd.f32 %v451, %v580
    %s598 = scalar_lea.vmem %s0, 256
    %v599 = vld [vmem:[%s598] sm:$0xff]
    %v600 = vld [vmem:[%s598 + $0x8] sm:$0xff]
    %v601 = vld [vmem:[%s598 + $0x10] sm:$0xff]
    %v602 = vld [vmem:[%s598 + $0x18] sm:$0xff]
    %v603 = vld [vmem:[%s598 + $0x20] sm:$0xff]
    %v604 = vld [vmem:[%s598 + $0x28] sm:$0xff]
    %v605 = vld [vmem:[%s598 + $0x30] sm:$0xff]
    %v606 = vld [vmem:[%s598 + $0x38] sm:$0xff]
    %s607 = scalar_lea.vmem %s1, 256
    %v608 = vld [vmem:[%s607] sm:$0xff]
    %v609 = vld [vmem:[%s607 + $0x8] sm:$0xff]
    %v610 = vld [vmem:[%s607 + $0x10] sm:$0xff]
    %v611 = vld [vmem:[%s607 + $0x18] sm:$0xff]
    %v612 = vld [vmem:[%s607 + $0x20] sm:$0xff]
    %v613 = vld [vmem:[%s607 + $0x28] sm:$0xff]
    %v614 = vld [vmem:[%s607 + $0x30] sm:$0xf]
    %v615 = vld [vmem:[%s607 + $0x38] sm:$0xf]
    %v617 = vsel %vm80, %v599, 0
    %v620 = vsel %vm80, %v600, 0
    %v623 = vsel %vm80, %v601, 0
    %v626 = vsel %vm80, %v602, 0
    %v629 = vsel %vm80, %v603, 0
    %v632 = vsel %vm80, %v604, 0
    %v635 = vsel %vm80, %v605, 0
    %v638 = vsel %vm80, %v606, 0
    %v641 = vsel %vm105, %v614, 0
    %v644 = vsel %vm105, %v615, 0
    %646 = vmatpush.msra.mxu0 0.0
    %647 = vmatpush.msra.mxu0 0.0
    %648 = vmatpush.msra.mxu0 0.0
    %649 = vmatpush.msra.mxu0 0.0
    %650 = vmatpush.msra.mxu0 0.0
    %651 = vmatpush.msra.mxu0 0.0
    %652 = vmatpush.msra.mxu0 0.0
    %653 = vmatpush.msra.mxu0 0.0
    %654 = vmatpush.msra.mxu0 0.0
    %655 = vmatpush.msra.mxu0 0.0
    %656 = vmatpush.msra.mxu0 0.0
    %657 = vmatpush.msra.mxu0 0.0
    %658 = vmatpush.msra.mxu0 %v641
    %659 = vmatpush.msra.mxu0 %v612
    %660 = vmatpush.msra.mxu0 %v610
    %661 = vmatpush.msra.mxu0 %v608
    %662 = vmatmul.f32.gmra.mxu0 %v617
    %v663 = vpop.f32.mrf.mxu0
    %v664 = vadd.f32 0.0, %v663
    %665 = vmatmul.f32.gmra.mxu0 %v620
    %v666 = vpop.f32.mrf.mxu0
    %v667 = vadd.f32 0.0, %v666
    %668 = vmatmul.f32.gmra.mxu0 %v623
    %v669 = vpop.f32.mrf.mxu0
    %v670 = vadd.f32 0.0, %v669
    %671 = vmatmul.f32.gmra.mxu0 %v626
    %v672 = vpop.f32.mrf.mxu0
    %v673 = vadd.f32 0.0, %v672
    %674 = vmatmul.f32.gmra.mxu0 %v629
    %v675 = vpop.f32.mrf.mxu0
    %v676 = vadd.f32 0.0, %v675
    %677 = vmatmul.f32.gmra.mxu0 %v632
    %v678 = vpop.f32.mrf.mxu0
    %v679 = vadd.f32 0.0, %v678
    %680 = vmatmul.f32.gmra.mxu0 %v635
    %v681 = vpop.f32.mrf.mxu0
    %v682 = vadd.f32 0.0, %v681
    %683 = vmatmul.f32.gmra.mxu0 %v638
    %v684 = vpop.f32.mrf.mxu0
    %v685 = vadd.f32 0.0, %v684
    %686 = vdwg.mxu0
    %687 = vmatpush.msra.mxu0 0.0
    %688 = vmatpush.msra.mxu0 0.0
    %689 = vmatpush.msra.mxu0 0.0
    %690 = vmatpush.msra.mxu0 0.0
    %691 = vmatpush.msra.mxu0 0.0
    %692 = vmatpush.msra.mxu0 0.0
    %693 = vmatpush.msra.mxu0 0.0
    %694 = vmatpush.msra.mxu0 0.0
    %695 = vmatpush.msra.mxu0 0.0
    %696 = vmatpush.msra.mxu0 0.0
    %697 = vmatpush.msra.mxu0 0.0
    %698 = vmatpush.msra.mxu0 0.0
    %699 = vmatpush.msra.mxu0 %v644
    %700 = vmatpush.msra.mxu0 %v613
    %701 = vmatpush.msra.mxu0 %v611
    %702 = vmatpush.msra.mxu0 %v609
    %703 = vmatmul.f32.gmra.mxu0 %v617
    %v704 = vpop.f32.mrf.mxu0
    %v705 = vadd.f32 0.0, %v704
    %706 = vmatmul.f32.gmra.mxu0 %v620
    %v707 = vpop.f32.mrf.mxu0
    %v708 = vadd.f32 0.0, %v707
    %709 = vmatmul.f32.gmra.mxu0 %v623
    %v710 = vpop.f32.mrf.mxu0
    %v711 = vadd.f32 0.0, %v710
    %712 = vmatmul.f32.gmra.mxu0 %v626
    %v713 = vpop.f32.mrf.mxu0
    %v714 = vadd.f32 0.0, %v713
    %715 = vmatmul.f32.gmra.mxu0 %v629
    %v716 = vpop.f32.mrf.mxu0
    %v717 = vadd.f32 0.0, %v716
    %718 = vmatmul.f32.gmra.mxu0 %v632
    %v719 = vpop.f32.mrf.mxu0
    %v720 = vadd.f32 0.0, %v719
    %721 = vmatmul.f32.gmra.mxu0 %v635
    %v722 = vpop.f32.mrf.mxu0
    %v723 = vadd.f32 0.0, %v722
    %724 = vmatmul.f32.gmra.mxu0 %v638
    %v725 = vpop.f32.mrf.mxu0
    %v726 = vadd.f32 0.0, %v725
    %727 = vdwg.mxu0
    %v728 = vadd.f32 %v582, %v664
    %v729 = vadd.f32 %v583, %v705
    %v730 = vadd.f32 %v584, %v667
    %v731 = vadd.f32 %v585, %v708
    %v732 = vadd.f32 %v586, %v670
    %v733 = vadd.f32 %v587, %v711
    %v734 = vadd.f32 %v588, %v673
    %v735 = vadd.f32 %v589, %v714
    %v736 = vadd.f32 %v590, %v676
    %v737 = vadd.f32 %v591, %v717
    %v738 = vadd.f32 %v592, %v679
    %v739 = vadd.f32 %v593, %v720
    %v740 = vadd.f32 %v594, %v682
    %v741 = vadd.f32 %v595, %v723
    %v742 = vadd.f32 %v596, %v685
    %v743 = vadd.f32 %v597, %v726
    %v745 = vperm.slane %v45, 0
    %v746 = vperm.slane %v45, 1
    %v749 = vadd.f32 %v745, %v728
    %v750 = vadd.f32 %v746, %v729
    %v751 = vadd.f32 %v745, %v730
    %v752 = vadd.f32 %v746, %v731
    %v753 = vadd.f32 %v745, %v732
    %v754 = vadd.f32 %v746, %v733
    %v755 = vadd.f32 %v745, %v734
    %v756 = vadd.f32 %v746, %v735
    %v757 = vadd.f32 %v745, %v736
    %v758 = vadd.f32 %v746, %v737
    %v759 = vadd.f32 %v745, %v738
    %v760 = vadd.f32 %v746, %v739
    %v761 = vadd.f32 %v745, %v740
    %v762 = vadd.f32 %v746, %v741
    %v763 = vadd.f32 %v745, %v742
    %v764 = vadd.f32 %v746, %v743
    %v765 = vmax.f32 %v749, 0.0
    %v766 = vmax.f32 %v750, 0.0
    %v767 = vmax.f32 %v751, 0.0
    %v768 = vmax.f32 %v752, 0.0
    %v769 = vmax.f32 %v753, 0.0
    %v770 = vmax.f32 %v754, 0.0
    %v771 = vmax.f32 %v755, 0.0
    %v772 = vmax.f32 %v756, 0.0
    %v773 = vmax.f32 %v757, 0.0
    %v774 = vmax.f32 %v758, 0.0
    %v775 = vmax.f32 %v759, 0.0
    %v776 = vmax.f32 %v760, 0.0
    %v777 = vmax.f32 %v761, 0.0
    %v778 = vmax.f32 %v762, 0.0
    %v779 = vmax.f32 %v763, 0.0
    %v780 = vmax.f32 %v764, 0.0
    %v781 = vld [vmem:[%s5] sm:$0xff]
    %v782 = vld [vmem:[%s5 + $0x8] sm:$0xff]
    %v783 = vld [vmem:[%s5 + $0x10] sm:$0xff]
    %v784 = vld [vmem:[%s5 + $0x18] sm:$0xff]
    %v785 = vld [vmem:[%s5 + $0x20] sm:$0xff]
    %v786 = vld [vmem:[%s5 + $0x28] sm:$0xff]
    %v787 = vld [vmem:[%s5 + $0x30] sm:$0xff]
    %v788 = vld [vmem:[%s5 + $0x38] sm:$0xff]
    %v789 = vld [vmem:[%s5 + $0x40] sm:$0xff]
    %v790 = vld [vmem:[%s5 + $0x48] sm:$0xff]
    %v791 = vld [vmem:[%s5 + $0x50] sm:$0xff]
    %v792 = vld [vmem:[%s5 + $0x58] sm:$0xff]
    %v793 = vld [vmem:[%s5 + $0x60] sm:$0xff]
    %v794 = vld [vmem:[%s5 + $0x68] sm:$0xff]
    %v795 = vld [vmem:[%s5 + $0x70] sm:$0xff]
    %v796 = vld [vmem:[%s5 + $0x78] sm:$0xff]
    %v797 = vld [vmem:[%s5 + $0x80] sm:$0xff]
    %v798 = vld [vmem:[%s5 + $0x88] sm:$0xff]
    %vm799 = vcmask 130048
    %v801 = vsel %vm799, %v766, 0
    %v804 = vsel %vm799, %v768, 0
    %v807 = vsel %vm799, %v770, 0
    %v810 = vsel %vm799, %v772, 0
    %v813 = vsel %vm799, %v774, 0
    %v816 = vsel %vm799, %v776, 0
    %v819 = vsel %vm799, %v778, 0
    %v822 = vsel %vm799, %v780, 0
    %824 = vmatpush.msra.mxu0 %v796
    %825 = vmatpush.msra.mxu0 %v795
    %826 = vmatpush.msra.mxu0 %v794
    %827 = vmatpush.msra.mxu0 %v793
    %828 = vmatpush.msra.mxu0 %v792
    %829 = vmatpush.msra.mxu0 %v791
    %830 = vmatpush.msra.mxu0 %v790
    %831 = vmatpush.msra.mxu0 %v789
    %832 = vmatpush.msra.mxu0 %v788
    %833 = vmatpush.msra.mxu0 %v787
    %834 = vmatpush.msra.mxu0 %v786
    %835 = vmatpush.msra.mxu0 %v785
    %836 = vmatpush.msra.mxu0 %v784
    %837 = vmatpush.msra.mxu0 %v783
    %838 = vmatpush.msra.mxu0 %v782
    %839 = vmatpush.msra.mxu0 %v781
    %840 = vmatmul.f32.gmra.mxu0 %v765
    %v841 = vpop.f32.mrf.mxu0
    %v842 = vadd.f32 0.0, %v841
    %843 = vmatmul.f32.gmra.mxu0 %v767
    %v844 = vpop.f32.mrf.mxu0
    %v845 = vadd.f32 0.0, %v844
    %846 = vmatmul.f32.gmra.mxu0 %v769
    %v847 = vpop.f32.mrf.mxu0
    %v848 = vadd.f32 0.0, %v847
    %849 = vmatmul.f32.gmra.mxu0 %v771
    %v850 = vpop.f32.mrf.mxu0
    %v851 = vadd.f32 0.0, %v850
    %852 = vmatmul.f32.gmra.mxu0 %v773
    %v853 = vpop.f32.mrf.mxu0
    %v854 = vadd.f32 0.0, %v853
    %855 = vmatmul.f32.gmra.mxu0 %v775
    %v856 = vpop.f32.mrf.mxu0
    %v857 = vadd.f32 0.0, %v856
    %858 = vmatmul.f32.gmra.mxu0 %v777
    %v859 = vpop.f32.mrf.mxu0
    %v860 = vadd.f32 0.0, %v859
    %861 = vmatmul.f32.gmra.mxu0 %v779
    %v862 = vpop.f32.mrf.mxu0
    %v863 = vadd.f32 0.0, %v862
    %864 = vdwg.mxu0
    %865 = vmatpush.msra.mxu0 0.0
    %866 = vmatpush.msra.mxu0 0.0
    %867 = vmatpush.msra.mxu0 0.0
    %868 = vmatpush.msra.mxu0 0.0
    %869 = vmatpush.msra.mxu0 0.0
    %870 = vmatpush.msra.mxu0 0.0
    %871 = vmatpush.msra.mxu0 0.0
    %872 = vmatpush.msra.mxu0 0.0
    %873 = vmatpush.msra.mxu0 0.0
    %874 = vmatpush.msra.mxu0 0.0
    %875 = vmatpush.msra.mxu0 0.0
    %876 = vmatpush.msra.mxu0 0.0
    %877 = vmatpush.msra.mxu0 0.0
    %878 = vmatpush.msra.mxu0 0.0
    %879 = vmatpush.msra.mxu0 %v798
    %880 = vmatpush.msra.mxu0 %v797
    %881 = vmatmul.f32.gmra.mxu0 %v801
    %v882 = vpop.f32.mrf.mxu0
    %v883 = vadd.f32 %v842, %v882
    %884 = vmatmul.f32.gmra.mxu0 %v804
    %v885 = vpop.f32.mrf.mxu0
    %v886 = vadd.f32 %v845, %v885
    %887 = vmatmul.f32.gmra.mxu0 %v807
    %v888 = vpop.f32.mrf.mxu0
    %v889 = vadd.f32 %v848, %v888
    %890 = vmatmul.f32.gmra.mxu0 %v810
    %v891 = vpop.f32.mrf.mxu0
    %v892 = vadd.f32 %v851, %v891
    %893 = vmatmul.f32.gmra.mxu0 %v813
    %v894 = vpop.f32.mrf.mxu0
    %v895 = vadd.f32 %v854, %v894
    %896 = vmatmul.f32.gmra.mxu0 %v816
    %v897 = vpop.f32.mrf.mxu0
    %v898 = vadd.f32 %v857, %v897
    %899 = vmatmul.f32.gmra.mxu0 %v819
    %v900 = vpop.f32.mrf.mxu0
    %v901 = vadd.f32 %v860, %v900
    %902 = vmatmul.f32.gmra.mxu0 %v822
    %v903 = vpop.f32.mrf.mxu0
    %v904 = vadd.f32 %v863, %v903
    %905 = vdwg.mxu0
    %s906 = scalar_lea.vmem %s5, 144
    %v907 = vld [vmem:[%s906] sm:$0xff]
    %v908 = vld [vmem:[%s906 + $0x8] sm:$0xff]
    %v909 = vld [vmem:[%s906 + $0x10] sm:$0xff]
    %v910 = vld [vmem:[%s906 + $0x18] sm:$0xff]
    %v911 = vld [vmem:[%s906 + $0x20] sm:$0xff]
    %v912 = vld [vmem:[%s906 + $0x28] sm:$0xff]
    %v913 = vld [vmem:[%s906 + $0x30] sm:$0xff]
    %v914 = vld [vmem:[%s906 + $0x38] sm:$0xff]
    %v915 = vld [vmem:[%s906 + $0x40] sm:$0xff]
    %v916 = vld [vmem:[%s906 + $0x48] sm:$0xff]
    %v917 = vld [vmem:[%s906 + $0x50] sm:$0xff]
    %v918 = vld [vmem:[%s906 + $0x58] sm:$0xff]
    %v919 = vld [vmem:[%s906 + $0x60] sm:$0xff]
    %v920 = vld [vmem:[%s906 + $0x68] sm:$0xff]
    %v921 = vld [vmem:[%s906 + $0x70] sm:$0xff]
    %v922 = vld [vmem:[%s906 + $0x78] sm:$0xff]
    %v923 = vld [vmem:[%s906 + $0x80] sm:$0xff]
    %v924 = vld [vmem:[%s906 + $0x88] sm:$0xff]
    %925 = vmatpush.msra.mxu0 %v922
    %926 = vmatpush.msra.mxu0 %v921
    %927 = vmatpush.msra.mxu0 %v920
    %928 = vmatpush.msra.mxu0 %v919
    %929 = vmatpush.msra.mxu0 %v918
    %930 = vmatpush.msra.mxu0 %v917
    %931 = vmatpush.msra.mxu0 %v916
    %932 = vmatpush.msra.mxu0 %v915
    %933 = vmatpush.msra.mxu0 %v914
    %934 = vmatpush.msra.mxu0 %v913
    %935 = vmatpush.msra.mxu0 %v912
    %936 = vmatpush.msra.mxu0 %v911
    %937 = vmatpush.msra.mxu0 %v910
    %938 = vmatpush.msra.mxu0 %v909
    %939 = vmatpush.msra.mxu0 %v908
    %940 = vmatpush.msra.mxu0 %v907
    %941 = vmatmul.f32.gmra.mxu0 %v765
    %v942 = vpop.f32.mrf.mxu0
    %v943 = vadd.f32 0.0, %v942
    %944 = vmatmul.f32.gmra.mxu0 %v767
    %v945 = vpop.f32.mrf.mxu0
    %v946 = vadd.f32 0.0, %v945
    %947 = vmatmul.f32.gmra.mxu0 %v769
    %v948 = vpop.f32.mrf.mxu0
    %v949 = vadd.f32 0.0, %v948
    %950 = vmatmul.f32.gmra.mxu0 %v771
    %v951 = vpop.f32.mrf.mxu0
    %v952 = vadd.f32 0.0, %v951
    %953 = vmatmul.f32.gmra.mxu0 %v773
    %v954 = vpop.f32.mrf.mxu0
    %v955 = vadd.f32 0.0, %v954
    %956 = vmatmul.f32.gmra.mxu0 %v775
    %v957 = vpop.f32.mrf.mxu0
    %v958 = vadd.f32 0.0, %v957
    %959 = vmatmul.f32.gmra.mxu0 %v777
    %v960 = vpop.f32.mrf.mxu0
    %v961 = vadd.f32 0.0, %v960
    %962 = vmatmul.f32.gmra.mxu0 %v779
    %v963 = vpop.f32.mrf.mxu0
    %v964 = vadd.f32 0.0, %v963
    %965 = vdwg.mxu0
    %966 = vmatpush.msra.mxu0 0.0
    %967 = vmatpush.msra.mxu0 0.0
    %968 = vmatpush.msra.mxu0 0.0
    %969 = vmatpush.msra.mxu0 0.0
    %970 = vmatpush.msra.mxu0 0.0
    %971 = vmatpush.msra.mxu0 0.0
    %972 = vmatpush.msra.mxu0 0.0
    %973 = vmatpush.msra.mxu0 0.0
    %974 = vmatpush.msra.mxu0 0.0
    %975 = vmatpush.msra.mxu0 0.0
    %976 = vmatpush.msra.mxu0 0.0
    %977 = vmatpush.msra.mxu0 0.0
    %978 = vmatpush.msra.mxu0 0.0
    %979 = vmatpush.msra.mxu0 0.0
    %980 = vmatpush.msra.mxu0 %v924
    %981 = vmatpush.msra.mxu0 %v923
    %982 = vmatmul.f32.gmra.mxu0 %v801
    %v983 = vpop.f32.mrf.mxu0
    %v984 = vadd.f32 %v943, %v983
    %985 = vmatmul.f32.gmra.mxu0 %v804
    %v986 = vpop.f32.mrf.mxu0
    %v987 = vadd.f32 %v946, %v986
    %988 = vmatmul.f32.gmra.mxu0 %v807
    %v989 = vpop.f32.mrf.mxu0
    %v990 = vadd.f32 %v949, %v989
    %991 = vmatmul.f32.gmra.mxu0 %v810
    %v992 = vpop.f32.mrf.mxu0
    %v993 = vadd.f32 %v952, %v992
    %994 = vmatmul.f32.gmra.mxu0 %v813
    %v995 = vpop.f32.mrf.mxu0
    %v996 = vadd.f32 %v955, %v995
    %997 = vmatmul.f32.gmra.mxu0 %v816
    %v998 = vpop.f32.mrf.mxu0
    %v999 = vadd.f32 %v958, %v998
    %1000 = vmatmul.f32.gmra.mxu0 %v819
    %v1001 = vpop.f32.mrf.mxu0
    %v1002 = vadd.f32 %v961, %v1001
    %1003 = vmatmul.f32.gmra.mxu0 %v822
    %v1004 = vpop.f32.mrf.mxu0
    %v1005 = vadd.f32 %v964, %v1004
    %1006 = vdwg.mxu0
    %v1007 = vmax.f32 %v883, %v984
    %v1008 = vmax.f32 %v886, %v987
    %v1009 = vmax.f32 %v889, %v990
    %v1010 = vmax.f32 %v892, %v993
    %v1011 = vmax.f32 %v895, %v996
    %v1012 = vmax.f32 %v898, %v999
    %v1013 = vmax.f32 %v901, %v1002
    %v1014 = vmax.f32 %v904, %v1005
    %vm1015 = vcmask 588800
    %1016 = vst.msk [vmem:[#allocation2] sm:$0xff] %vm1015, %v1007
    %1017 = vst.msk [vmem:[#allocation2 + $0x8] sm:$0xff] %vm1015, %v1008
    %1018 = vst.msk [vmem:[#allocation2 + $0x10] sm:$0xff] %vm1015, %v1009
    %1019 = vst.msk [vmem:[#allocation2 + $0x18] sm:$0xff] %vm1015, %v1010
    %1020 = vst.msk [vmem:[#allocation2 + $0x20] sm:$0xff] %vm1015, %v1011
    %1021 = vst.msk [vmem:[#allocation2 + $0x28] sm:$0xff] %vm1015, %v1012
    %1022 = vst.msk [vmem:[#allocation2 + $0x30] sm:$0xff] %vm1015, %v1013
    %1023 = vst.msk [vmem:[#allocation2 + $0x38] sm:$0xff] %vm1015, %v1014
    %v1024 = vld [vmem:[#allocation2] ss:$2 sm:$0xff]
    %s1025 = scalar_lea.vmem [#allocation2], 16
    %v1026 = vld [vmem:[%s1025] ss:$2 sm:$0xff]
    %s1027 = scalar_lea.vmem [#allocation2], 32
    %v1028 = vld [vmem:[%s1027] ss:$2 sm:$0xff]
    %s1029 = scalar_lea.vmem [#allocation2], 48
    %v1030 = vld [vmem:[%s1029] ss:$2 sm:$0xff]
    %s1031 = scalar_lea.vmem [#allocation2], 1
    %v1032 = vld [vmem:[%s1031] ss:$2 sm:$0xff]
    %s1033 = scalar_lea.vmem [#allocation2], 17
    %v1034 = vld [vmem:[%s1033] ss:$2 sm:$0xff]
    %s1035 = scalar_lea.vmem [#allocation2], 33
    %v1036 = vld [vmem:[%s1035] ss:$2 sm:$0xff]
    %s1037 = scalar_lea.vmem [#allocation2], 49
    %v1038 = vld [vmem:[%s1037] ss:$2 sm:$0xff]
    %v1039 = vmax.f32 %v1024, %v1032
    %v1040 = vmax.f32 %v1026, %v1034
    %v1041 = vmax.f32 %v1028, %v1036
    %v1042 = vmax.f32 %v1030, %v1038
    %v1043 = vld [vmem:[%s4] sm:$0x1]
    %v1044 = vld [vmem:[%s3] sm:$0xff]
    %v1045 = vld [vmem:[%s3 + $0x8] sm:$0xff]
    %v1046 = vld [vmem:[%s3 + $0x10] sm:$0xff]
    %v1047 = vld [vmem:[%s3 + $0x18] sm:$0xff]
    %v1048 = vld [vmem:[%s3 + $0x20] sm:$0xff]
    %v1049 = vld [vmem:[%s3 + $0x28] sm:$0xff]
    %v1050 = vld [vmem:[%s3 + $0x30] sm:$0xff]
    %v1051 = vld [vmem:[%s3 + $0x38] sm:$0xff]
    %v1052 = vld [vmem:[%s3 + $0x40] sm:$0xff]
    %vm1057 = vcmask 1046528
    %v1058 = vrot.slane %v1039, 1
    %v1059 = vrot.slane %v1040, 1
    %v1060 = vsel %vm1057, %v1058, %v1059
    %v1061 = vrot.slane %v1041, 1
    %v1062 = vrot.slane %v1042, 1
    %v1063 = vsel %vm1057, %v1061, %v1062
    %s1064 = scalar_lea.vmem %s3, 72
    %v1065 = vld [vmem:[%s1064] sm:$0xff]
    %v1066 = vld [vmem:[%s1064 + $0x8] sm:$0xff]
    %v1067 = vld [vmem:[%s1064 + $0x10] sm:$0xff]
    %v1068 = vld [vmem:[%s1064 + $0x18] sm:$0xff]
    %v1069 = vld [vmem:[%s1064 + $0x20] sm:$0xff]
    %v1070 = vld [vmem:[%s1064 + $0x28] sm:$0xff]
    %v1071 = vld [vmem:[%s1064 + $0x30] sm:$0xff]
    %v1072 = vld [vmem:[%s1064 + $0x38] sm:$0xff]
    %v1073 = vld [vmem:[%s1064 + $0x40] sm:$0xff]
    %v1074 = vsel %vm1015, %v1060, 0
    %v1076 = vsel %vm1015, %v1063, 0
    %1078 = vmatpush.msra.mxu0 0.0
    %1079 = vmatpush.msra.mxu0 0.0
    %1080 = vmatpush.msra.mxu0 0.0
    %1081 = vmatpush.msra.mxu0 0.0
    %1082 = vmatpush.msra.mxu0 0.0
    %1083 = vmatpush.msra.mxu0 0.0
    %1084 = vmatpush.msra.mxu0 0.0
    %1085 = vmatpush.msra.mxu0 %v1073
    %1086 = vmatpush.msra.mxu0 %v1072
    %1087 = vmatpush.msra.mxu0 %v1071
    %1088 = vmatpush.msra.mxu0 %v1070
    %1089 = vmatpush.msra.mxu0 %v1069
    %1090 = vmatpush.msra.mxu0 %v1068
    %1091 = vmatpush.msra.mxu0 %v1067
    %1092 = vmatpush.msra.mxu0 %v1066
    %1093 = vmatpush.msra.mxu0 %v1065
    %1094 = vmatmul.f32.gmra.mxu0 %v1074
    %v1095 = vpop.f32.mrf.mxu0
    %v1096 = vadd.f32 0.0, %v1095
    %1097 = vmatmul.f32.gmra.mxu0 %v1076
    %v1098 = vpop.f32.mrf.mxu0
    %v1099 = vadd.f32 0.0, %v1098
    %1100 = vdwg.mxu0
    %v1101 = vsel %vm1015, %v1039, 0
    %v1103 = vsel %vm1015, %v1041, 0
    %1105 = vmatpush.msra.mxu0 0.0
    %1106 = vmatpush.msra.mxu0 0.0
    %1107 = vmatpush.msra.mxu0 0.0
    %1108 = vmatpush.msra.mxu0 0.0
    %1109 = vmatpush.msra.mxu0 0.0
    %1110 = vmatpush.msra.mxu0 0.0
    %1111 = vmatpush.msra.mxu0 0.0
    %1112 = vmatpush.msra.mxu0 %v1052
    %1113 = vmatpush.msra.mxu0 %v1051
    %1114 = vmatpush.msra.mxu0 %v1050
    %1115 = vmatpush.msra.mxu0 %v1049
    %1116 = vmatpush.msra.mxu0 %v1048
    %1117 = vmatpush.msra.mxu0 %v1047
    %1118 = vmatpush.msra.mxu0 %v1046
    %1119 = vmatpush.msra.mxu0 %v1045
    %1120 = vmatpush.msra.mxu0 %v1044
    %1121 = vmatmul.f32.gmra.mxu0 %v1101
    %v1122 = vpop.f32.mrf.mxu0
    %v1123 = vadd.f32 %v1096, %v1122
    %1124 = vmatmul.f32.gmra.mxu0 %v1103
    %v1125 = vpop.f32.mrf.mxu0
    %v1126 = vadd.f32 %v1099, %v1125
    %1127 = vdwg.mxu0
    %vm1128 = vcmask 1045504
    %v1129 = vrot.slane %v1039, 2
    %v1130 = vrot.slane %v1040, 2
    %v1131 = vsel %vm1128, %v1129, %v1130
    %v1132 = vrot.slane %v1041, 2
    %v1133 = vrot.slane %v1042, 2
    %v1134 = vsel %vm1128, %v1132, %v1133
    %s1135 = scalar_lea.vmem %s3, 144
    %v1136 = vld [vmem:[%s1135] sm:$0xff]
    %v1137 = vld [vmem:[%s1135 + $0x8] sm:$0xff]
    %v1138 = vld [vmem:[%s1135 + $0x10] sm:$0xff]
    %v1139 = vld [vmem:[%s1135 + $0x18] sm:$0xff]
    %v1140 = vld [vmem:[%s1135 + $0x20] sm:$0xff]
    %v1141 = vld [vmem:[%s1135 + $0x28] sm:$0xff]
    %v1142 = vld [vmem:[%s1135 + $0x30] sm:$0xff]
    %v1143 = vld [vmem:[%s1135 + $0x38] sm:$0xff]
    %v1144 = vld [vmem:[%s1135 + $0x40] sm:$0xff]
    %v1145 = vsel %vm1015, %v1131, 0
    %v1147 = vsel %vm1015, %v1134, 0
    %1149 = vmatpush.msra.mxu0 0.0
    %1150 = vmatpush.msra.mxu0 0.0
    %1151 = vmatpush.msra.mxu0 0.0
    %1152 = vmatpush.msra.mxu0 0.0
    %1153 = vmatpush.msra.mxu0 0.0
    %1154 = vmatpush.msra.mxu0 0.0
    %1155 = vmatpush.msra.mxu0 0.0
    %1156 = vmatpush.msra.mxu0 %v1144
    %1157 = vmatpush.msra.mxu0 %v1143
    %1158 = vmatpush.msra.mxu0 %v1142
    %1159 = vmatpush.msra.mxu0 %v1141
    %1160 = vmatpush.msra.mxu0 %v1140
    %1161 = vmatpush.msra.mxu0 %v1139
    %1162 = vmatpush.msra.mxu0 %v1138
    %1163 = vmatpush.msra.mxu0 %v1137
    %1164 = vmatpush.msra.mxu0 %v1136
    %1165 = vmatmul.f32.gmra.mxu0 %v1145
    %v1166 = vpop.f32.mrf.mxu0
    %v1167 = vadd.f32 0.0, %v1166
    %1168 = vmatmul.f32.gmra.mxu0 %v1147
    %v1169 = vpop.f32.mrf.mxu0
    %v1170 = vadd.f32 0.0, %v1169
    %1171 = vdwg.mxu0
    %v1172 = vadd.f32 %v1123, %v1167
    %v1173 = vadd.f32 %v1126, %v1170
    %vm1174 = vcmask 1044480
    %v1175 = vrot.slane %v1039, 3
    %v1176 = vrot.slane %v1040, 3
    %v1177 = vsel %vm1174, %v1175, %v1176
    %v1178 = vrot.slane %v1041, 3
    %v1179 = vrot.slane %v1042, 3
    %v1180 = vsel %vm1174, %v1178, %v1179
    %s1181 = scalar_lea.vmem %s3, 216
    %v1182 = vld [vmem:[%s1181] sm:$0xff]
    %v1183 = vld [vmem:[%s1181 + $0x8] sm:$0xff]
    %v1184 = vld [vmem:[%s1181 + $0x10] sm:$0xff]
    %v1185 = vld [vmem:[%s1181 + $0x18] sm:$0xff]
    %v1186 = vld [vmem:[%s1181 + $0x20] sm:$0xff]
    %v1187 = vld [vmem:[%s1181 + $0x28] sm:$0xff]
    %v1188 = vld [vmem:[%s1181 + $0x30] sm:$0xff]
    %v1189 = vld [vmem:[%s1181 + $0x38] sm:$0xff]
    %v1190 = vld [vmem:[%s1181 + $0x40] sm:$0xff]
    %v1191 = vsel %vm1015, %v1177, 0
    %v1193 = vsel %vm1015, %v1180, 0
    %1195 = vmatpush.msra.mxu0 0.0
    %1196 = vmatpush.msra.mxu0 0.0
    %1197 = vmatpush.msra.mxu0 0.0
    %1198 = vmatpush.msra.mxu0 0.0
    %1199 = vmatpush.msra.mxu0 0.0
    %1200 = vmatpush.msra.mxu0 0.0
    %1201 = vmatpush.msra.mxu0 0.0
    %1202 = vmatpush.msra.mxu0 %v1190
    %1203 = vmatpush.msra.mxu0 %v1189
    %1204 = vmatpush.msra.mxu0 %v1188
    %1205 = vmatpush.msra.mxu0 %v1187
    %1206 = vmatpush.msra.mxu0 %v1186
    %1207 = vmatpush.msra.mxu0 %v1185
    %1208 = vmatpush.msra.mxu0 %v1184
    %1209 = vmatpush.msra.mxu0 %v1183
    %1210 = vmatpush.msra.mxu0 %v1182
    %1211 = vmatmul.f32.gmra.mxu0 %v1191
    %v1212 = vpop.f32.mrf.mxu0
    %v1213 = vadd.f32 0.0, %v1212
    %1214 = vmatmul.f32.gmra.mxu0 %v1193
    %v1215 = vpop.f32.mrf.mxu0
    %v1216 = vadd.f32 0.0, %v1215
    %1217 = vdwg.mxu0
    %v1218 = vadd.f32 %v1172, %v1213
    %v1219 = vadd.f32 %v1173, %v1216
    %v1220 = vrot.slane %v1039, 4
    %v1221 = vrot.slane %v1040, 4
    %v1222 = vsel %vm105, %v1220, %v1221
    %v1223 = vrot.slane %v1041, 4
    %v1224 = vrot.slane %v1042, 4
    %v1225 = vsel %vm105, %v1223, %v1224
    %s1226 = scalar_lea.vmem %s3, 288
    %v1227 = vld [vmem:[%s1226] sm:$0xff]
    %v1228 = vld [vmem:[%s1226 + $0x8] sm:$0xff]
    %v1229 = vld [vmem:[%s1226 + $0x10] sm:$0xff]
    %v1230 = vld [vmem:[%s1226 + $0x18] sm:$0xff]
    %v1231 = vld [vmem:[%s1226 + $0x20] sm:$0xff]
    %v1232 = vld [vmem:[%s1226 + $0x28] sm:$0xff]
    %v1233 = vld [vmem:[%s1226 + $0x30] sm:$0xff]
    %v1234 = vld [vmem:[%s1226 + $0x38] sm:$0xff]
    %v1235 = vld [vmem:[%s1226 + $0x40] sm:$0xff]
    %v1236 = vsel %vm1015, %v1222, 0
    %v1238 = vsel %vm1015, %v1225, 0
    %1240 = vmatpush.msra.mxu0 0.0
    %1241 = vmatpush.msra.mxu0 0.0
    %1242 = vmatpush.msra.mxu0 0.0
    %1243 = vmatpush.msra.mxu0 0.0
    %1244 = vmatpush.msra.mxu0 0.0
    %1245 = vmatpush.msra.mxu0 0.0
    %1246 = vmatpush.msra.mxu0 0.0
    %1247 = vmatpush.msra.mxu0 %v1235
    %1248 = vmatpush.msra.mxu0 %v1234
    %1249 = vmatpush.msra.mxu0 %v1233
    %1250 = vmatpush.msra.mxu0 %v1232
    %1251 = vmatpush.msra.mxu0 %v1231
    %1252 = vmatpush.msra.mxu0 %v1230
    %1253 = vmatpush.msra.mxu0 %v1229
    %1254 = vmatpush.msra.mxu0 %v1228
    %1255 = vmatpush.msra.mxu0 %v1227
    %1256 = vmatmul.f32.gmra.mxu0 %v1236
    %v1257 = vpop.f32.mrf.mxu0
    %v1258 = vadd.f32 0.0, %v1257
    %1259 = vmatmul.f32.gmra.mxu0 %v1238
    %v1260 = vpop.f32.mrf.mxu0
    %v1261 = vadd.f32 0.0, %v1260
    %1262 = vdwg.mxu0
    %v1263 = vadd.f32 %v1218, %v1258
    %v1264 = vadd.f32 %v1219, %v1261
    %v1266 = vperm.slane %v1043, 0
    %v1268 = vadd.f32 %v1266, %v1263
    %v1269 = vadd.f32 %v1266, %v1264
    %v1270 = vmax.f32 %v1268, 0.0
    %v1271 = vmax.f32 %v1269, 0.0
    %v1272 = vld [vmem:[%s6] sm:$0xff]
    %v1273 = vld [vmem:[%s6 + $0x8] sm:$0xff]
    %v1274 = vld [vmem:[%s6 + $0x10] sm:$0xff]
    %v1275 = vld [vmem:[%s6 + $0x18] sm:$0xff]
    %v1276 = vld [vmem:[%s6 + $0x20] sm:$0xff]
    %v1277 = vld [vmem:[%s6 + $0x28] sm:$0xff]
    %v1278 = vld [vmem:[%s6 + $0x30] sm:$0xff]
    %v1279 = vld [vmem:[%s6 + $0x38] sm:$0xff]
    %v1280 = vld [vmem:[%s6 + $0x40] sm:$0xff]
    %v1281 = vld [vmem:[%s6 + $0x48] sm:$0xff]
    %v1282 = vld [vmem:[%s6 + $0x50] sm:$0xff]
    %v1283 = vld [vmem:[%s6 + $0x58] sm:$0xff]
    %v1284 = vld [vmem:[%s6 + $0x60] sm:$0xff]
    %v1285 = vld [vmem:[%s6 + $0x68] sm:$0xff]
    %v1286 = vld [vmem:[%s6 + $0x70] sm:$0xff]
    %v1287 = vld [vmem:[%s6 + $0x78] sm:$0xff]
    %1288 = vmatpush.msra.mxu0 %v1287
    %1289 = vmatpush.msra.mxu0 %v1286
    %1290 = vmatpush.msra.mxu0 %v1285
    %1291 = vmatpush.msra.mxu0 %v1284
    %1292 = vmatpush.msra.mxu0 %v1283
    %1293 = vmatpush.msra.mxu0 %v1282
    %1294 = vmatpush.msra.mxu0 %v1281
    %1295 = vmatpush.msra.mxu0 %v1280
    %1296 = vmatpush.msra.mxu0 %v1279
    %1297 = vmatpush.msra.mxu0 %v1278
    %1298 = vmatpush.msra.mxu0 %v1277
    %1299 = vmatpush.msra.mxu0 %v1276
    %1300 = vmatpush.msra.mxu0 %v1275
    %1301 = vmatpush.msra.mxu0 %v1274
    %1302 = vmatpush.msra.mxu0 %v1273
    %1303 = vmatpush.msra.mxu0 %v1272
    %1304 = vmatmul.f32.gmra.mxu0 %v1270
    %v1305 = vpop.f32.mrf.mxu0
    %v1306 = vadd.f32 0.0, %v1305
    %1307 = vmatmul.f32.gmra.mxu0 %v1271
    %v1308 = vpop.f32.mrf.mxu0
    %v1309 = vadd.f32 0.0, %v1308
    %1310 = vdwg.mxu0
    %s1311 = scalar_lea.vmem %s6, 128
    %v1312 = vld [vmem:[%s1311] sm:$0xff]
    %v1313 = vld [vmem:[%s1311 + $0x8] sm:$0xff]
    %v1314 = vld [vmem:[%s1311 + $0x10] sm:$0xff]
    %v1315 = vld [vmem:[%s1311 + $0x18] sm:$0xff]
    %v1316 = vld [vmem:[%s1311 + $0x20] sm:$0xff]
    %v1317 = vld [vmem:[%s1311 + $0x28] sm:$0xff]
    %v1318 = vld [vmem:[%s1311 + $0x30] sm:$0xff]
    %v1319 = vld [vmem:[%s1311 + $0x38] sm:$0xff]
    %v1320 = vld [vmem:[%s1311 + $0x40] sm:$0xff]
    %v1321 = vld [vmem:[%s1311 + $0x48] sm:$0xff]
    %v1322 = vld [vmem:[%s1311 + $0x50] sm:$0xff]
    %v1323 = vld [vmem:[%s1311 + $0x58] sm:$0xff]
    %v1324 = vld [vmem:[%s1311 + $0x60] sm:$0xff]
    %v1325 = vld [vmem:[%s1311 + $0x68] sm:$0xff]
    %v1326 = vld [vmem:[%s1311 + $0x70] sm:$0xff]
    %v1327 = vld [vmem:[%s1311 + $0x78] sm:$0xff]
    %1328 = vmatpush.msra.mxu0 %v1327
    %1329 = vmatpush.msra.mxu0 %v1326
    %1330 = vmatpush.msra.mxu0 %v1325
    %1331 = vmatpush.msra.mxu0 %v1324
    %1332 = vmatpush.msra.mxu0 %v1323
    %1333 = vmatpush.msra.mxu0 %v1322
    %1334 = vmatpush.msra.mxu0 %v1321
    %1335 = vmatpush.msra.mxu0 %v1320
    %1336 = vmatpush.msra.mxu0 %v1319
    %1337 = vmatpush.msra.mxu0 %v1318
    %1338 = vmatpush.msra.mxu0 %v1317
    %1339 = vmatpush.msra.mxu0 %v1316
    %1340 = vmatpush.msra.mxu0 %v1315
    %1341 = vmatpush.msra.mxu0 %v1314
    %1342 = vmatpush.msra.mxu0 %v1313
    %1343 = vmatpush.msra.mxu0 %v1312
    %1344 = vmatmul.f32.gmra.mxu0 %v1270
    %v1345 = vpop.f32.mrf.mxu0
    %v1346 = vadd.f32 0.0, %v1345
    %1347 = vmatmul.f32.gmra.mxu0 %v1271
    %v1348 = vpop.f32.mrf.mxu0
    %v1349 = vadd.f32 0.0, %v1348
    %1350 = vdwg.mxu0
    %v1351 = vmax.f32 %v1306, %v1346
    %v1352 = vmax.f32 %v1309, %v1349
    %vm1353 = vcmask 523264
    %1354 = vst.msk [vmem:[#allocation3] sm:$0xff] %vm1353, %v1351
    %1355 = vst.msk [vmem:[#allocation3 + $0x8] sm:$0xff] %vm1353, %v1352
    %v1356 = vld [vmem:[%s8] sm:$0x1]
    %v1357 = vld [vmem:[#allocation3] ss:$8 sm:$0x3]
    %s1358 = scalar_lea.vmem [#allocation3], 1
    %v1359 = vld [vmem:[%s1358] ss:$8 sm:$0x3]
    %v1360 = vmax.f32 %v1357, %v1359
    %v1361 = vld [vmem:[%s7] sm:$0xff]
    %v1362 = vld [vmem:[%s7 + $0x8] sm:$0xff]
    %v1363 = vld [vmem:[%s7 + $0x10] sm:$0xff]
    %v1364 = vld [vmem:[%s7 + $0x18] sm:$0xff]
    %v1365 = vld [vmem:[%s7 + $0x20] sm:$0xff]
    %v1366 = vld [vmem:[%s7 + $0x28] sm:$0xff]
    %v1367 = vld [vmem:[%s7 + $0x30] sm:$0xff]
    %v1368 = vld [vmem:[%s7 + $0x38] sm:$0xff]
    %v1370 = vsel %vm1353, %v1360, 0
    %1372 = vmatpush.msra.mxu0 0.0
    %1373 = vmatpush.msra.mxu0 0.0
    %1374 = vmatpush.msra.mxu0 0.0
    %1375 = vmatpush.msra.mxu0 0.0
    %1376 = vmatpush.msra.mxu0 0.0
    %1377 = vmatpush.msra.mxu0 0.0
    %1378 = vmatpush.msra.mxu0 0.0
    %1379 = vmatpush.msra.mxu0 0.0
    %1380 = vmatpush.msra.mxu0 %v1368
    %1381 = vmatpush.msra.mxu0 %v1367
    %1382 = vmatpush.msra.mxu0 %v1366
    %1383 = vmatpush.msra.mxu0 %v1365
    %1384 = vmatpush.msra.mxu0 %v1364
    %1385 = vmatpush.msra.mxu0 %v1363
    %1386 = vmatpush.msra.mxu0 %v1362
    %1387 = vmatpush.msra.mxu0 %v1361
    %1388 = vmatmul.f32.gmra.mxu0 %v1370
    %v1389 = vpop.f32.mrf.mxu0
    %v1390 = vadd.f32 0.0, %v1389
    %1391 = vdwg.mxu0
    %v1393 = vperm.slane %v1356, 0
    %v1395 = vadd.f32 %v1393, %v1390
    %s1396 = scalar_lea.vmem [#allocation3], 2
    %v1397 = vld [vmem:[%s1396] ss:$8 sm:$0x3]
    %s1398 = scalar_lea.vmem [#allocation3], 3
    %v1399 = vld [vmem:[%s1398] ss:$8 sm:$0x3]
    %v1400 = vmax.f32 %v1397, %v1399
    %s1401 = scalar_lea.vmem %s7, 64
    %v1402 = vld [vmem:[%s1401] sm:$0xff]
    %v1403 = vld [vmem:[%s1401 + $0x8] sm:$0xff]
    %v1404 = vld [vmem:[%s1401 + $0x10] sm:$0xff]
    %v1405 = vld [vmem:[%s1401 + $0x18] sm:$0xff]
    %v1406 = vld [vmem:[%s1401 + $0x20] sm:$0xff]
    %v1407 = vld [vmem:[%s1401 + $0x28] sm:$0xff]
    %v1408 = vld [vmem:[%s1401 + $0x30] sm:$0xff]
    %v1409 = vld [vmem:[%s1401 + $0x38] sm:$0xff]
    %v1411 = vsel %vm1353, %v1400, 0
    %1413 = vmatpush.msra.mxu0 0.0
    %1414 = vmatpush.msra.mxu0 0.0
    %1415 = vmatpush.msra.mxu0 0.0
    %1416 = vmatpush.msra.mxu0 0.0
    %1417 = vmatpush.msra.mxu0 0.0
    %1418 = vmatpush.msra.mxu0 0.0
    %1419 = vmatpush.msra.mxu0 0.0
    %1420 = vmatpush.msra.mxu0 0.0
    %1421 = vmatpush.msra.mxu0 %v1409
    %1422 = vmatpush.msra.mxu0 %v1408
    %1423 = vmatpush.msra.mxu0 %v1407
    %1424 = vmatpush.msra.mxu0 %v1406
    %1425 = vmatpush.msra.mxu0 %v1405
    %1426 = vmatpush.msra.mxu0 %v1404
    %1427 = vmatpush.msra.mxu0 %v1403
    %1428 = vmatpush.msra.mxu0 %v1402
    %1429 = vmatmul.f32.gmra.mxu0 %v1411
    %v1430 = vpop.f32.mrf.mxu0
    %v1431 = vadd.f32 0.0, %v1430
    %1432 = vdwg.mxu0
    %v1433 = vadd.f32 %v1395, %v1431
    %s1434 = scalar_lea.vmem [#allocation3], 4
    %v1435 = vld [vmem:[%s1434] ss:$8 sm:$0x3]
    %s1436 = scalar_lea.vmem [#allocation3], 5
    %v1437 = vld [vmem:[%s1436] ss:$8 sm:$0x3]
    %v1438 = vmax.f32 %v1435, %v1437
    %s1439 = scalar_lea.vmem %s7, 128
    %v1440 = vld [vmem:[%s1439] sm:$0xff]
    %v1441 = vld [vmem:[%s1439 + $0x8] sm:$0xff]
    %v1442 = vld [vmem:[%s1439 + $0x10] sm:$0xff]
    %v1443 = vld [vmem:[%s1439 + $0x18] sm:$0xff]
    %v1444 = vld [vmem:[%s1439 + $0x20] sm:$0xff]
    %v1445 = vld [vmem:[%s1439 + $0x28] sm:$0xff]
    %v1446 = vld [vmem:[%s1439 + $0x30] sm:$0xff]
    %v1447 = vld [vmem:[%s1439 + $0x38] sm:$0xff]
    %v1449 = vsel %vm1353, %v1438, 0
    %1451 = vmatpush.msra.mxu0 0.0
    %1452 = vmatpush.msra.mxu0 0.0
    %1453 = vmatpush.msra.mxu0 0.0
    %1454 = vmatpush.msra.mxu0 0.0
    %1455 = vmatpush.msra.mxu0 0.0
    %1456 = vmatpush.msra.mxu0 0.0
    %1457 = vmatpush.msra.mxu0 0.0
    %1458 = vmatpush.msra.mxu0 0.0
    %1459 = vmatpush.msra.mxu0 %v1447
    %1460 = vmatpush.msra.mxu0 %v1446
    %1461 = vmatpush.msra.mxu0 %v1445
    %1462 = vmatpush.msra.mxu0 %v1444
    %1463 = vmatpush.msra.mxu0 %v1443
    %1464 = vmatpush.msra.mxu0 %v1442
    %1465 = vmatpush.msra.mxu0 %v1441
    %1466 = vmatpush.msra.mxu0 %v1440
    %1467 = vmatmul.f32.gmra.mxu0 %v1449
    %v1468 = vpop.f32.mrf.mxu0
    %v1469 = vadd.f32 0.0, %v1468
    %1470 = vdwg.mxu0
    %v1471 = vadd.f32 %v1433, %v1469
    %s1472 = scalar_lea.vmem [#allocation3], 6
    %v1473 = vld [vmem:[%s1472] ss:$8 sm:$0x3]
    %s1474 = scalar_lea.vmem [#allocation3], 7
    %v1475 = vld [vmem:[%s1474] ss:$8 sm:$0x3]
    %v1476 = vmax.f32 %v1473, %v1475
    %s1477 = scalar_lea.vmem %s7, 192
    %v1478 = vld [vmem:[%s1477] sm:$0xff]
    %v1479 = vld [vmem:[%s1477 + $0x8] sm:$0xff]
    %v1480 = vld [vmem:[%s1477 + $0x10] sm:$0xff]
    %v1481 = vld [vmem:[%s1477 + $0x18] sm:$0xff]
    %v1482 = vld [vmem:[%s1477 + $0x20] sm:$0xff]
    %v1483 = vld [vmem:[%s1477 + $0x28] sm:$0xff]
    %v1484 = vld [vmem:[%s1477 + $0x30] sm:$0xff]
    %v1485 = vld [vmem:[%s1477 + $0x38] sm:$0xff]
    %v1487 = vsel %vm1353, %v1476, 0
    %1489 = vmatpush.msra.mxu0 0.0
    %1490 = vmatpush.msra.mxu0 0.0
    %1491 = vmatpush.msra.mxu0 0.0
    %1492 = vmatpush.msra.mxu0 0.0
    %1493 = vmatpush.msra.mxu0 0.0
    %1494 = vmatpush.msra.mxu0 0.0
    %1495 = vmatpush.msra.mxu0 0.0
    %1496 = vmatpush.msra.mxu0 0.0
    %1497 = vmatpush.msra.mxu0 %v1485
    %1498 = vmatpush.msra.mxu0 %v1484
    %1499 = vmatpush.msra.mxu0 %v1483
    %1500 = vmatpush.msra.mxu0 %v1482
    %1501 = vmatpush.msra.mxu0 %v1481
    %1502 = vmatpush.msra.mxu0 %v1480
    %1503 = vmatpush.msra.mxu0 %v1479
    %1504 = vmatpush.msra.mxu0 %v1478
    %1505 = vmatmul.f32.gmra.mxu0 %v1487
    %v1506 = vpop.f32.mrf.mxu0
    %v1507 = vadd.f32 0.0, %v1506
    %1508 = vdwg.mxu0
    %v1509 = vadd.f32 %v1471, %v1507
    %v1510 = vmax.f32 %v1509, 0.0
    %v1511 = vld [vmem:[%s9] sm:$0xff]
    %v1512 = vld [vmem:[%s9 + $0x8] sm:$0xff]
    %v1513 = vld [vmem:[%s9 + $0x10] sm:$0xff]
    %v1514 = vld [vmem:[%s9 + $0x18] sm:$0xff]
    %v1515 = vld [vmem:[%s9 + $0x20] sm:$0xff]
    %v1516 = vld [vmem:[%s9 + $0x28] sm:$0xff]
    %v1517 = vld [vmem:[%s9 + $0x30] sm:$0xff]
    %v1518 = vld [vmem:[%s9 + $0x38] sm:$0xff]
    %v1519 = vld [vmem:[%s9 + $0x40] sm:$0xff]
    %v1520 = vld [vmem:[%s9 + $0x48] sm:$0xff]
    %v1521 = vld [vmem:[%s9 + $0x50] sm:$0xff]
    %v1522 = vld [vmem:[%s9 + $0x58] sm:$0xff]
    %v1523 = vld [vmem:[%s9 + $0x60] sm:$0xff]
    %v1524 = vld [vmem:[%s9 + $0x68] sm:$0xff]
    %v1525 = vld [vmem:[%s9 + $0x70] sm:$0xff]
    %v1526 = vld [vmem:[%s9 + $0x78] sm:$0xff]
    %v1527 = vld [vmem:[%s10] sm:$0x1]
    %v1529 = vperm.slane %v1527, 0
    %1531 = vmatpush.msra.mxu0 %v1526
    %1532 = vmatpush.msra.mxu0 %v1525
    %1533 = vmatpush.msra.mxu0 %v1524
    %1534 = vmatpush.msra.mxu0 %v1523
    %1535 = vmatpush.msra.mxu0 %v1522
    %1536 = vmatpush.msra.mxu0 %v1521
    %1537 = vmatpush.msra.mxu0 %v1520
    %1538 = vmatpush.msra.mxu0 %v1519
    %1539 = vmatpush.msra.mxu0 %v1518
    %1540 = vmatpush.msra.mxu0 %v1517
    %1541 = vmatpush.msra.mxu0 %v1516
    %1542 = vmatpush.msra.mxu0 %v1515
    %1543 = vmatpush.msra.mxu0 %v1514
    %1544 = vmatpush.msra.mxu0 %v1513
    %1545 = vmatpush.msra.mxu0 %v1512
    %1546 = vmatpush.msra.mxu0 %v1511
    %1547 = vmatmul.f32.gmra.mxu0 %v1510
    %v1548 = vpop.f32.mrf.mxu0
    %v1549 = vadd.f32 %v1529, %v1548
    %1550 = vdwg.mxu0
    %v1551 = vmax.f32 %v1549, 0.0
    %v1552 = vld [vmem:[%s11] sm:$0xff]
    %v1553 = vld [vmem:[%s11 + $0x8] sm:$0xff]
    %v1554 = vld [vmem:[%s11 + $0x10] sm:$0xff]
    %v1555 = vld [vmem:[%s11 + $0x18] sm:$0xff]
    %v1556 = vld [vmem:[%s11 + $0x20] sm:$0xff]
    %v1557 = vld [vmem:[%s11 + $0x28] sm:$0xff]
    %v1558 = vld [vmem:[%s11 + $0x30] sm:$0xff]
    %v1559 = vld [vmem:[%s11 + $0x38] sm:$0xff]
    %v1560 = vld [vmem:[%s11 + $0x40] sm:$0xff]
    %v1561 = vld [vmem:[%s11 + $0x48] sm:$0xff]
    %v1562 = vld [vmem:[%s11 + $0x50] sm:$0xff]
    %v1563 = vld [vmem:[%s11 + $0x58] sm:$0xff]
    %v1564 = vld [vmem:[%s11 + $0x60] sm:$0xff]
    %v1565 = vld [vmem:[%s11 + $0x68] sm:$0xff]
    %v1566 = vld [vmem:[%s11 + $0x70] sm:$0xff]
    %v1567 = vld [vmem:[%s11 + $0x78] sm:$0xff]
    %v1568 = vld [vmem:[%s12] sm:$0x1]
    %v1570 = vperm.slane %v1568, 0
    %1572 = vmatpush.msra.mxu0 %v1567
    %1573 = vmatpush.msra.mxu0 %v1566
    %1574 = vmatpush.msra.mxu0 %v1565
    %1575 = vmatpush.msra.mxu0 %v1564
    %1576 = vmatpush.msra.mxu0 %v1563
    %1577 = vmatpush.msra.mxu0 %v1562
    %1578 = vmatpush.msra.mxu0 %v1561
    %1579 = vmatpush.msra.mxu0 %v1560
    %1580 = vmatpush.msra.mxu0 %v1559
    %1581 = vmatpush.msra.mxu0 %v1558
    %1582 = vmatpush.msra.mxu0 %v1557
    %1583 = vmatpush.msra.mxu0 %v1556
    %1584 = vmatpush.msra.mxu0 %v1555
    %1585 = vmatpush.msra.mxu0 %v1554
    %1586 = vmatpush.msra.mxu0 %v1553
    %1587 = vmatpush.msra.mxu0 %v1552
    %1588 = vmatmul.f32.gmra.mxu0 %v1551
    %v1589 = vpop.f32.mrf.mxu0
    %v1590 = vadd.f32 %v1570, %v1589
    %1591 = vdwg.mxu0
    %1592 = vst [vmem:[#allocation4] sm:$0x3] %v1590
    // Predicated region
    $region54: #{lenet_forward.1} parent=1 // pred_check
      _
    $region55: #{lenet_forward.1} parent=1 // pred_check_branch
      %1594 = sbr.rel (0) target = $region57
    $region56: #{lenet_forward.1} parent=1 // pred_region
      %1596 = vsyncadd [#allocation5], 0
      %s1598 = sshll.u32 [#allocation4], 4
      %s1599 = int_to_ptr.vmem [resolvable:$true] %s1598
      %s1600 = sshll.u32 %s13, 4
      %s1601 = int_to_ptr.hbm [resolvable:$true] %s1600
      %1603 = dma.vmem_to_hbm [thread:$0]  %s1599, 32, %s1601, [#allocation5]
    $region57: #{lenet_forward.1} parent=1 // pred_fallthru
      _
    // Predicated region
    $region58: #{lenet_forward.1} parent=1 // pred_check
      _
    $region59: #{lenet_forward.1} parent=1 // pred_check_branch
      %1605 = sbr.rel (0) target = $region61
    $region60: #{lenet_forward.1} parent=1 // pred_region
      %1607 = dma.done [#allocation5], 32
    $region61: #{lenet_forward.1} parent=1 // pred_fallthru
      _
    %1608 = vsyncpa [#allocation5], 1

</llo_original>
